<compile_context>
chip_gen: v6e
topology: v6e:2x2x1
jax: 0.10.0
libtpu: 0.0.40
codegen_flags: <defaults>
</compile_context>

<pallas_src>
import jax
import jax.numpy as jnp
from jax.experimental import pallas as pl
from jax.experimental.pallas import tpu as pltpu

# ---------------------------------------------------------------------------
# Configuration (small, deterministic shapes consistent with the module)
# ---------------------------------------------------------------------------
NUM_CLASS = 10          # Config.num_classes (FMNIST)
WORKER_NUM = 4          # Config.expert_num
LINEAR_DIM = 64
FEA_DIM = 512
BATCH = 2
IMG_C, IMG_H, IMG_W = 1, 16, 16
IMG_FLAT = IMG_C * IMG_H * IMG_W

HEAD = WORKER_NUM * NUM_CLASS * NUM_CLASS           # 400
HEAD_PAD = ((HEAD + 127) // 128) * 128               # 512 (lane-dense)
ROW_PAD = 16                                          # bf16 sublane packing
ROW_BLOCK = 256                                       # grid block for big N

_VMEM = pl.BlockSpec(memory_space=pltpu.MemorySpace.VMEM)


# ---------------------------------------------------------------------------
# Pallas kernels
# ---------------------------------------------------------------------------
def _gcn2_kernel(emb_ref, adj_ref, w1_ref, w2_ref, o_ref):
    """Parameter-only branch: gc1 -> LeakyReLU(0.2) -> gc2 (run ONCE at prep).

    gc1: h = adj @ (emb @ w1); h = leaky_relu(h, 0.2)
    gc2: f = adj @ (h @ w2)   reassociated as (adj @ h) @ w2 so the wide
         (., 6500) operand goes through the MXU only once.
    """
    h = jnp.dot(emb_ref[...], w1_ref[...], preferred_element_type=jnp.float32)
    h = jnp.dot(adj_ref[...], h, preferred_element_type=jnp.float32)
    h = jnp.where(h > 0, h, 0.2 * h)
    h = jnp.dot(adj_ref[...], h, preferred_element_type=jnp.float32)
    o_ref[...] = jnp.dot(h, w2_ref[...], preferred_element_type=jnp.float32)


def _fused_forward_kernel(x_ref, wbb_ref, bbb_ref, w1_ref, b1_ref,
                          fmain_ref, fbias_ref, gsum_ref, o_ref):
    """Single fused per-block kernel (one row-block of the batch).

    backbone stand-in Linear+ReLU -> linear_1+ReLU
    -> einsum('rijk,ni->nrjk') as one lane-dense matmul + broadcast bias
    -> lane-dense softmax over groups of C (group sums via e @ GSUM).
    Output stored flat / lane-dense as (rows, HEAD_PAD).
    """
    # Stand-in backbone: flatten -> Linear(IMG_FLAT, 512) -> ReLU
    feat = jnp.dot(x_ref[...], wbb_ref[...],
                   preferred_element_type=jnp.float32) + bbb_ref[...]
    feat = jnp.maximum(feat, 0.0)

    # linear_1: Linear(512, 64) -> ReLU
    x64 = jnp.dot(feat.astype(jnp.bfloat16), w1_ref[...],
                  preferred_element_type=jnp.float32) + b1_ref[...]
    x64 = jnp.maximum(x64, 0.0)

    # NOTE: the original forward also computes fea_to_NT_layer(x) but never
    # uses it; that dead linear is intentionally removed here.

    # einsum head: fmain columns laid out as r*C*C + j*C + k, so x64 @ fmain
    # reproduces the contraction over i.  fbias broadcasts over rows.
    z = jnp.dot(x64.astype(jnp.bfloat16), fmain_ref[...],
                preferred_element_type=jnp.float32) + fbias_ref[...]

    # Lane-dense softmax over groups of C along the lane axis:
    #   - one per-row max over all HEAD_PAD lanes for stability (z values here
    #     are O(0.01), so a row-wide max is safe; avoids any (n, R*C, C)
    #     relayout),
    #   - group sums via the block-diagonal ones matrix GSUM (kept in the
    #     dense (8,128) layout; tiny matmul on the MXU),
    #   - approx reciprocal on the EUP slot.
    z = z - jnp.max(z, axis=-1, keepdims=True)
    e = jnp.exp(z)
    denom = jnp.dot(e, gsum_ref[...], preferred_element_type=jnp.float32)
    o_ref[...] = e * pl.reciprocal(denom, approx=True)


# ---------------------------------------------------------------------------
# Plain-JAX glue: parameter init, gen_adj, one-time prep, forward
# ---------------------------------------------------------------------------
def gen_adj(A):
    """D = diag(A.sum(1)^-0.5); adj = (A @ D)^T @ D   (same as the PyTorch code)."""
    D = jnp.power(A.sum(1), -0.5)
    D = jnp.diag(D)
    return jnp.matmul(jnp.matmul(A, D).T, D)


def init_params(key):
    ks = jax.random.split(key, 10)
    gc2_out = LINEAR_DIM * NUM_CLASS * NUM_CLASS + NUM_CLASS * NUM_CLASS

    def uni(k, shape, stdv):
        return jax.random.uniform(k, shape, jnp.float32, -stdv, stdv)

    params = {
        # stand-in backbone (see TODO at top)
        "w_bb": uni(ks[0], (IMG_FLAT, FEA_DIM), 1.0 / jnp.sqrt(IMG_FLAT)),
        "b_bb": jnp.zeros((FEA_DIM,), jnp.float32),
        # linear_1: Linear(512, 64)
        "w1": uni(ks[1], (FEA_DIM, LINEAR_DIM), 1.0 / jnp.sqrt(FEA_DIM)),
        "b1": uni(ks[2], (LINEAR_DIM,), 1.0 / jnp.sqrt(FEA_DIM)),
        # gc1: GraphConvolution(worker_num, 64); stdv = 1/sqrt(out_features)
        "w_gc1": uni(ks[5], (WORKER_NUM, 64), 1.0 / jnp.sqrt(64.0)),
        # gc2: GraphConvolution(64, linear_dim*C*C + C*C)
        "w_gc2": uni(ks[6], (64, gc2_out), 1.0 / jnp.sqrt(float(gc2_out))),
        # constructor inputs emb / adj
        "emb": jax.random.uniform(ks[7], (WORKER_NUM, WORKER_NUM), jnp.float32),
        "adj_raw": jax.random.uniform(ks[8], (WORKER_NUM, WORKER_NUM),
                                      jnp.float32, 0.1, 1.0),
    }
    # fea_to_NT params are not created: their output is dead in the original
    # forward and has been removed from the hot path.
    params["adj"] = gen_adj(params["adj_raw"])
    return params


def prepare_params(p):
    """One-time, parameter-only precompute (hoisted out of the per-step path)."""
    r, c, ld = WORKER_NUM, NUM_CLASS, LINEAR_DIM

    f = pl.pallas_call(
        _gcn2_kernel,
        out_shape=jax.ShapeDtypeStruct((r, (ld + 1) * c * c), jnp.float32),
        in_specs=[_VMEM, _VMEM, _VMEM, _VMEM],
        out_specs=_VMEM,
    )(p["emb"], p["adj"], p["w_gc1"], p["w_gc2"])          # (R, (ld+1)*C*C)

    f4 = f.reshape(r, ld + 1, c * c)
    # fmain[i, r*C*C + j*C + k] = f[r, i, j, k]  (reproduces the einsum)
    fmain = f4[:, :-1].transpose(1, 0, 2).reshape(ld, HEAD)
    fbias = f4[:, -1].reshape(1, HEAD)                     # f[:, -1], bcast over N

    # Pad the head axis to a lane-dense multiple of 128 with ZERO columns.
    fmain = jnp.pad(fmain, ((0, 0), (0, HEAD_PAD - HEAD)))
    fbias = jnp.pad(fbias, ((0, 0), (0, HEAD_PAD - HEAD)))

    # Block-diagonal group-sum matrix for the lane-dense softmax:
    #   real columns (< HEAD): ones within each group of C,
    #   padded columns       : identity only (never mixes with real groups,
    #                          keeps their denominator non-zero / finite).
    idx = jnp.arange(HEAD_PAD)
    grp = idx // c
    same_group = ((grp[:, None] == grp[None, :])
                  & (idx[:, None] < HEAD) & (idx[None, :] < HEAD))
    pad_diag = (idx[:, None] == idx[None, :]) & (idx[None, :] >= HEAD)
    gsum = (same_group | pad_diag).astype(jnp.float32)     # (HEAD_PAD, HEAD_PAD)

    return {
        "w_bb": p["w_bb"].astype(jnp.bfloat16),
        "b_bb": p["b_bb"].reshape(1, -1),                   # (1, 512) f32
        "w1": p["w1"].astype(jnp.bfloat16),
        "b1": p["b1"].reshape(1, -1),                       # (1, 64)  f32
        "fmain": fmain.astype(jnp.bfloat16),                # (64, HEAD_PAD)
        "fbias": fbias,                                     # (1, HEAD_PAD) f32
        "gsum": gsum,                                       # (HEAD_PAD, HEAD_PAD) f32
    }


@jax.jit
def forward(x_nchw, prep):
    # NOTE: if the training loop evaluates many tiny steps (BATCH=2 each),
    # concatenate them along the row axis and make ONE call here -- at this
    # size the kernel is entirely launch/DMA-latency bound.
    n = x_nchw.shape[0]
    r, c = WORKER_NUM, NUM_CLASS

    # bf16 in the wrapper: halves the only per-step streamed DMA.
    xf = x_nchw.reshape(n, -1).astype(jnp.bfloat16)

    # Row block: whole (16-padded) batch for small N, 256-row blocks otherwise.
    if n >= ROW_BLOCK:
        rb = ROW_BLOCK
    else:
        rb = ((n + ROW_PAD - 1) // ROW_PAD) * ROW_PAD
    n_pad = ((n + rb - 1) // rb) * rb
    if n_pad != n:
        xf = jnp.pad(xf, ((0, n_pad - n), (0, 0)))

    out_flat = pl.pallas_call(
        _fused_forward_kernel,
        out_shape=jax.ShapeDtypeStruct((n_pad, HEAD_PAD), jnp.float32),
        grid_spec=pltpu.PrefetchScalarGridSpec(
            num_scalar_prefetch=0,
            grid=(n_pad // rb,),
            in_specs=[
                # streamed per row-block
                pl.BlockSpec((rb, IMG_FLAT), lambda i: (i, 0)),
                # VMEM-resident weights (constant block index -> no re-DMA)
                pl.BlockSpec((IMG_FLAT, FEA_DIM), lambda i: (0, 0)),
                pl.BlockSpec((1, FEA_DIM), lambda i: (0, 0)),
                pl.BlockSpec((FEA_DIM, LINEAR_DIM), lambda i: (0, 0)),
                pl.BlockSpec((1, LINEAR_DIM), lambda i: (0, 0)),
                pl.BlockSpec((LINEAR_DIM, HEAD_PAD), lambda i: (0, 0)),
                pl.BlockSpec((1, HEAD_PAD), lambda i: (0, 0)),
                pl.BlockSpec((HEAD_PAD, HEAD_PAD), lambda i: (0, 0)),
            ],
            out_specs=pl.BlockSpec((rb, HEAD_PAD), lambda i: (i, 0)),
        ),
        compiler_params=pltpu.CompilerParams(
            dimension_semantics=("parallel",)),
    )(xf, prep["w_bb"], prep["b_bb"], prep["w1"], prep["b1"],
      prep["fmain"], prep["fbias"], prep["gsum"])

    return out_flat[:n, :HEAD].reshape(n, r, c, c)


def forward_reference(x_nchw, p):
    """Pure-f32 JAX re-implementation of the original forward (correctness check)."""
    n = x_nchw.shape[0]
    xf = x_nchw.reshape(n, -1).astype(jnp.float32)
    feat = jnp.maximum(xf @ p["w_bb"] + p["b_bb"], 0.0)
    x64 = jnp.maximum(feat @ p["w1"] + p["b1"], 0.0)
    h = p["adj"] @ (p["emb"] @ p["w_gc1"])
    h = jnp.where(h > 0, h, 0.2 * h)
    f = p["adj"] @ (h @ p["w_gc2"])
    f = f.reshape(WORKER_NUM, LINEAR_DIM + 1, NUM_CLASS, NUM_CLASS)
    z = jnp.einsum("rijk,ni->nrjk", f[:, :-1], x64) + f[:, -1][None]
    return jax.nn.softmax(z, axis=-1)


# ---------------------------------------------------------------------------
if __name__ == "__main__":
    key = jax.random.PRNGKey(0)
    k_param, k_x = jax.random.split(key)

    params = init_params(k_param)
    prepared = prepare_params(params)          # one-time, parameter-only
    x = jax.random.normal(k_x, (BATCH, IMG_C, IMG_H, IMG_W), jnp.float32)

    out = jax.block_until_ready(forward(x, prepared))
    ref = jax.block_until_ready(forward_reference(x, params))

    assert out.shape == (BATCH, WORKER_NUM, NUM_CLASS, NUM_CLASS)
    assert bool(jnp.all(jnp.isfinite(out)))
    # bf16 matmul inputs + approx reciprocal in the kernel vs a pure-f32
    # reference: ~1e-4 level differences expected; tolerance set accordingly.
    max_err = float(jnp.max(jnp.abs(out - ref)))
    assert jnp.allclose(out, ref, atol=2e-3, rtol=2e-3), max_err

    print("KERNEL_OK")
</pallas_src>

<mosaic_0001>
module attributes {stable_mosaic.version = 11 : i64} {
  func.func @_gcn2_kernel(%arg0: memref<4x4xf32, #tpu.memory_space<vmem>>, %arg1: memref<4x4xf32, #tpu.memory_space<vmem>>, %arg2: memref<4x64xf32, #tpu.memory_space<vmem>>, %arg3: memref<64x6500xf32, #tpu.memory_space<vmem>>, %arg4: memref<4x6500xf32, #tpu.memory_space<vmem>>) attributes {dimension_semantics = [], scalar_prefetch = 0 : i64, scratch_operands = 0 : i64, tpu.core_type = #tpu.core_type<tc>} {
    %c0 = arith.constant 0 : index
    %c0_0 = arith.constant 0 : index
    %0 = vector.load %arg0[%c0, %c0_0] : memref<4x4xf32, #tpu.memory_space<vmem>>, vector<4x4xf32>
    %c0_1 = arith.constant 0 : index
    %c0_2 = arith.constant 0 : index
    %1 = vector.load %arg2[%c0_1, %c0_2] : memref<4x64xf32, #tpu.memory_space<vmem>>, vector<4x64xf32>
    %cst = arith.constant dense<0.000000e+00> : vector<4x64xf32>
    %2 = tpu.matmul %0, %1, %cst {dimension_numbers = #tpu.dot_dimension_numbers<[1], [0], [0], [1], [0, 0, 1, 1], [], []>} : vector<4x4xf32>, vector<4x64xf32>, vector<4x64xf32> -> vector<4x64xf32>
    %c0_3 = arith.constant 0 : index
    %c0_4 = arith.constant 0 : index
    %3 = vector.load %arg1[%c0_3, %c0_4] : memref<4x4xf32, #tpu.memory_space<vmem>>, vector<4x4xf32>
    %cst_5 = arith.constant dense<0.000000e+00> : vector<4x64xf32>
    %4 = tpu.matmul %3, %2, %cst_5 {dimension_numbers = #tpu.dot_dimension_numbers<[1], [0], [0], [1], [0, 0, 1, 1], [], []>} : vector<4x4xf32>, vector<4x64xf32>, vector<4x64xf32> -> vector<4x64xf32>
    %cst_6 = arith.constant 0.000000e+00 : f32
    %5 = vector.broadcast %cst_6 : f32 to vector<4x64xf32>
    %6 = arith.cmpf ogt, %4, %5 : vector<4x64xf32>
    %cst_7 = arith.constant 2.000000e-01 : f32
    %7 = vector.broadcast %cst_7 : f32 to vector<4x64xf32>
    %8 = arith.mulf %7, %4 : vector<4x64xf32>
    %9 = arith.select %6, %4, %8 : vector<4x64xi1>, vector<4x64xf32>
    %c0_8 = arith.constant 0 : index
    %c0_9 = arith.constant 0 : index
    %10 = vector.load %arg1[%c0_8, %c0_9] : memref<4x4xf32, #tpu.memory_space<vmem>>, vector<4x4xf32>
    %cst_10 = arith.constant dense<0.000000e+00> : vector<4x64xf32>
    %11 = tpu.matmul %10, %9, %cst_10 {dimension_numbers = #tpu.dot_dimension_numbers<[1], [0], [0], [1], [0, 0, 1, 1], [], []>} : vector<4x4xf32>, vector<4x64xf32>, vector<4x64xf32> -> vector<4x64xf32>
    %c0_11 = arith.constant 0 : index
    %c0_12 = arith.constant 0 : index
    %12 = vector.load %arg3[%c0_11, %c0_12] : memref<64x6500xf32, #tpu.memory_space<vmem>>, vector<64x6500xf32>
    %cst_13 = arith.constant dense<0.000000e+00> : vector<4x6500xf32>
    %13 = tpu.matmul %11, %12, %cst_13 {dimension_numbers = #tpu.dot_dimension_numbers<[1], [0], [0], [1], [0, 0, 1, 1], [], []>} : vector<4x64xf32>, vector<64x6500xf32>, vector<4x6500xf32> -> vector<4x6500xf32>
    %c0_14 = arith.constant 0 : index
    %c0_15 = arith.constant 0 : index
    %14 = vector.load %arg4[%c0_14, %c0_15] : memref<4x6500xf32, #tpu.memory_space<vmem>>, vector<4x6500xf32>
    tpu.vector_store %arg4[%c0_14, %c0_15], %13 {strides = array<i32>} : memref<4x6500xf32, #tpu.memory_space<vmem>>, vector<4x6500xf32>,
    return
  }
}

</mosaic_0001>

<llo_original>
// kernel: tpu_custom_call.1
$region0: #{tpu_custom_call.1}
  #allocation0 [shape = 'u32[]', space=smem, size = 0x4, offset = 0x4, fixed_abs, tag = 'smem constant byte address 0x4 - core index']
  #allocation1 [shape = 'u32[144,128]{1,0:T(1,128)}', space=vmem, size = 0x12000, scoped, tag = 'internal scratch']
  %s0 = inlined_call_operand.hbm [shape: f32[4,4], index: 0, kind: input, shape index: {}]
  %s1 = inlined_call_operand.hbm [shape: f32[4,4], index: 1, kind: input, shape index: {}]
  %s2 = inlined_call_operand.hbm [shape: f32[4,64], index: 2, kind: input, shape index: {}]
  %s3 = inlined_call_operand.hbm [shape: f32[64,6500], index: 3, kind: input, shape index: {}]
  %s4 = inlined_call_operand.hbm [shape: f32[4,6500], index: 4, kind: output, shape index: {}]
  %s5 = sld [smem:[#allocation0]]
  $region42: #{tpu_custom_call.1} parent=0
    _
  %s7 = ssub.s32 1, %s5
  %s8 = scalar_select 0, %s7, %s5
  $region1: #{tpu_custom_call.1} parent=0
    #allocation2 [shape = 'u8[2048]{0}', space=vmem, size = 0x800, scoped, tag = 'input window, operand 0, single buffered']
    #allocation3 [shape = 's32[1]{0}', space=sflag, size = 0x4, scoped, tag = 'scoped memory for tpu_custom_call.1']
    #allocation4 [shape = 's32[1]{0}', space=sflag, size = 0x4, scoped, tag = 'scoped memory for tpu_custom_call.1']
    #allocation5 [shape = 'u8[2048]{0}', space=vmem, size = 0x800, scoped, tag = 'input window, operand 1, single buffered']
    #allocation6 [shape = 's32[1]{0}', space=sflag, size = 0x4, scoped, tag = 'scoped memory for tpu_custom_call.1']
    #allocation7 [shape = 'u8[2048]{0}', space=vmem, size = 0x800, scoped, tag = 'input window, operand 2, single buffered']
    #allocation8 [shape = 'u8[1671168]{0}', space=vmem, size = 0x198000, scoped, tag = 'input window, operand 3, single buffered']
    #allocation9 [shape = 's32[1]{0}', space=sflag, size = 0x4, scoped, tag = 'scoped memory for tpu_custom_call.1']
    #allocation10 [shape = 'u8[104448]{0}', space=vmem, size = 0x19800, scoped, tag = 'output window, operand 0, single buffered']
    %9 = vsyncpa [#allocation3], 0
    %10 = vsyncpa [#allocation6], 0
    %11 = vsyncpa [#allocation9], 0
    %12 = vsyncpa [#allocation4], 0
    // Predicated region
    $region2: #{tpu_custom_call.1} parent=1 // pred_check
      _
    $region3: #{tpu_custom_call.1} parent=1 // pred_check_branch
      %14 = sbr.rel (0) target = $region5
    $region4: #{tpu_custom_call.1} parent=1 // pred_region
      %s16 = ssub.s32 64, 64
      %17 = vsyncadd [#allocation3], %s16
      %s19 = sshll.u32 [#allocation2], 4
      %s20 = int_to_ptr.vmem [resolvable:$true] %s19
      %22 = dma.hbm_to_vmem [thread:$0]  %s0, 64, %s20, [#allocation3]
    $region5: #{tpu_custom_call.1} parent=1 // pred_fallthru
      _
    // Predicated region
    $region6: #{tpu_custom_call.1} parent=1 // pred_check
      _
    $region7: #{tpu_custom_call.1} parent=1 // pred_check_branch
      %24 = sbr.rel (0) target = $region9
    $region8: #{tpu_custom_call.1} parent=1 // pred_region
      %s26 = ssub.s32 64, 64
      %27 = vsyncadd [#allocation6], %s26
      %s29 = sshll.u32 [#allocation5], 4
      %s30 = int_to_ptr.vmem [resolvable:$true] %s29
      %32 = dma.hbm_to_vmem [thread:$0]  %s1, 64, %s30, [#allocation6]
    $region9: #{tpu_custom_call.1} parent=1 // pred_fallthru
      _
    // Predicated region
    $region10: #{tpu_custom_call.1} parent=1 // pred_check
      _
    $region11: #{tpu_custom_call.1} parent=1 // pred_check_branch
      %34 = sbr.rel (0) target = $region13
    $region12: #{tpu_custom_call.1} parent=1 // pred_region
      %s36 = ssub.s32 64, 64
      %37 = vsyncadd [#allocation6], %s36
      %s39 = sshll.u32 [#allocation7], 4
      %s40 = int_to_ptr.vmem [resolvable:$true] %s39
      %42 = dma.hbm_to_vmem [thread:$0]  %s2, 64, %s40, [#allocation6]
    $region13: #{tpu_custom_call.1} parent=1 // pred_fallthru
      _
    // Predicated region
    $region14: #{tpu_custom_call.1} parent=1 // pred_check
      _
    $region15: #{tpu_custom_call.1} parent=1 // pred_check_branch
      %44 = sbr.rel (0) target = $region17
    $region16: #{tpu_custom_call.1} parent=1 // pred_region
      %s46 = ssub.s32 52224, 52224
      %47 = vsyncadd [#allocation9], %s46
      %s48 = sshll.u32 [#allocation8], 4
      %s49 = int_to_ptr.vmem [resolvable:$true] %s48
      %54 = dma.hbm_to_vmem [thread:$0]  %s3, 52224, %s49, [#allocation9], 6528, 6528, 408
    $region17: #{tpu_custom_call.1} parent=1 // pred_fallthru
      _
    // Predicated region
    $region18: #{tpu_custom_call.1} parent=1 // pred_check
      _
    $region19: #{tpu_custom_call.1} parent=1 // pred_check_branch
      %56 = sbr.rel (0) target = $region21
    $region20: #{tpu_custom_call.1} parent=1 // pred_region
      %57 = dma.done [#allocation3], 64
    $region21: #{tpu_custom_call.1} parent=1 // pred_fallthru
      _
    // Predicated region
    $region22: #{tpu_custom_call.1} parent=1 // pred_check
      _
    $region23: #{tpu_custom_call.1} parent=1 // pred_check_branch
      %59 = sbr.rel (0) target = $region25
    $region24: #{tpu_custom_call.1} parent=1 // pred_region
      %60 = dma.done [#allocation6], 64
    $region25: #{tpu_custom_call.1} parent=1 // pred_fallthru
      _
    // Predicated region
    $region26: #{tpu_custom_call.1} parent=1 // pred_check
      _
    $region27: #{tpu_custom_call.1} parent=1 // pred_check_branch
      %62 = sbr.rel (0) target = $region29
    $region28: #{tpu_custom_call.1} parent=1 // pred_region
      %63 = dma.done [#allocation6], 64
    $region29: #{tpu_custom_call.1} parent=1 // pred_fallthru
      _
    // Predicated region
    $region30: #{tpu_custom_call.1} parent=1 // pred_check
      _
    $region31: #{tpu_custom_call.1} parent=1 // pred_check_branch
      %65 = sbr.rel (0) target = $region33
    $region32: #{tpu_custom_call.1} parent=1 // pred_region
      %66 = dma.done [#allocation9], 52224
    $region33: #{tpu_custom_call.1} parent=1 // pred_fallthru
      _
    %v67 = vld [vmem:[#allocation2] sm:$0xf]
    %v68 = vld [vmem:[#allocation7] sm:$0xf]
    %vm69 = vcmask 31744
    %v71 = vsel %vm69, %v67, 0
    %vm73 = vcmask 1043456
    %v75 = vsel %vm73, %v68, 0
    %77 = vmatprep.subr.mxu0 0.0
    %78 = vmatpush1.msra.mxu0 0.0
    %79 = vmatprep.subr.mxu0 0.0
    %80 = vmatpush1.msra.mxu0 0.0
    %81 = vmatprep.subr.mxu0 0.0
    %82 = vmatpush1.msra.mxu0 0.0
    %83 = vmatprep.subr.mxu0 0.0
    %84 = vmatpush1.msra.mxu0 0.0
    %85 = vmatprep.subr.mxu0 0.0
    %86 = vmatpush1.msra.mxu0 0.0
    %87 = vmatprep.subr.mxu0 0.0
    %88 = vmatpush1.msra.mxu0 0.0
    %89 = vmatprep.subr.mxu0 0.0
    %90 = vmatpush1.msra.mxu0 0.0
    %91 = vmatprep.subr.mxu0 0.0
    %92 = vmatpush1.msra.mxu0 0.0
    %93 = vmatprep.subr.mxu0 0.0
    %94 = vmatpush1.msra.mxu0 0.0
    %95 = vmatprep.subr.mxu0 0.0
    %96 = vmatpush1.msra.mxu0 0.0
    %97 = vmatprep.subr.mxu0 0.0
    %98 = vmatpush1.msra.mxu0 0.0
    %99 = vmatprep.subr.mxu0 0.0
    %100 = vmatpush1.msra.mxu0 0.0
    %101 = vmatprep.subr.mxu0 0.0
    %102 = vmatpush1.msra.mxu0 0.0
    %103 = vmatprep.subr.mxu0 0.0
    %104 = vmatpush1.msra.mxu0 0.0
    %105 = vmatprep.subr.mxu0 0.0
    %106 = vmatpush1.msra.mxu0 0.0
    %107 = vmatprep.subr.mxu0 0.0
    %108 = vmatpush1.msra.mxu0 %v75
    %109 = vmatprep.subr.mxu0 0.0
    %110 = vmatpush2.msra.mxu0 0.0
    %111 = vmatprep.subr.mxu0 0.0
    %112 = vmatpush2.msra.mxu0 0.0
    %113 = vmatprep.subr.mxu0 0.0
    %114 = vmatpush2.msra.mxu0 0.0
    %115 = vmatprep.subr.mxu0 0.0
    %116 = vmatpush2.msra.mxu0 0.0
    %117 = vmatprep.subr.mxu0 0.0
    %118 = vmatpush2.msra.mxu0 0.0
    %119 = vmatprep.subr.mxu0 0.0
    %120 = vmatpush2.msra.mxu0 0.0
    %121 = vmatprep.subr.mxu0 0.0
    %122 = vmatpush2.msra.mxu0 0.0
    %123 = vmatprep.subr.mxu0 0.0
    %124 = vmatpush2.msra.mxu0 0.0
    %125 = vmatprep.subr.mxu0 0.0
    %126 = vmatpush2.msra.mxu0 0.0
    %127 = vmatprep.subr.mxu0 0.0
    %128 = vmatpush2.msra.mxu0 0.0
    %129 = vmatprep.subr.mxu0 0.0
    %130 = vmatpush2.msra.mxu0 0.0
    %131 = vmatprep.subr.mxu0 0.0
    %132 = vmatpush2.msra.mxu0 0.0
    %133 = vmatprep.subr.mxu0 0.0
    %134 = vmatpush2.msra.mxu0 0.0
    %135 = vmatprep.subr.mxu0 0.0
    %136 = vmatpush2.msra.mxu0 0.0
    %137 = vmatprep.subr.mxu0 0.0
    %138 = vmatpush2.msra.mxu0 0.0
    %139 = vmatprep.subr.mxu0 0.0
    %140 = vmatpush2.msra.mxu0 0.0
    %141 = vmatprep.mubr.f32.mxu0 0.0
    %142 = vmatmul.mubr.f32.gmra.mxu0 %v71
    %v143 = vpop.f32.mrf.mxu0
    %v144 = vadd.f32 0.0, %v143
    %v145 = vpop.f32.mrf.mxu0
    %146 = vdwg.mxu0
    %v147 = vld [vmem:[#allocation5] sm:$0xf]
    %v149 = vsel %vm69, %v147, 0
    %v152 = vsel %vm73, %v144, 0
    %154 = vmatprep.subr.mxu0 0.0
    %155 = vmatpush1.msra.mxu0 0.0
    %156 = vmatprep.subr.mxu0 0.0
    %157 = vmatpush1.msra.mxu0 0.0
    %158 = vmatprep.subr.mxu0 0.0
    %159 = vmatpush1.msra.mxu0 0.0
    %160 = vmatprep.subr.mxu0 0.0
    %161 = vmatpush1.msra.mxu0 0.0
    %162 = vmatprep.subr.mxu0 0.0
    %163 = vmatpush1.msra.mxu0 0.0
    %164 = vmatprep.subr.mxu0 0.0
    %165 = vmatpush1.msra.mxu0 0.0
    %166 = vmatprep.subr.mxu0 0.0
    %167 = vmatpush1.msra.mxu0 0.0
    %168 = vmatprep.subr.mxu0 0.0
    %169 = vmatpush1.msra.mxu0 0.0
    %170 = vmatprep.subr.mxu0 0.0
    %171 = vmatpush1.msra.mxu0 0.0
    %172 = vmatprep.subr.mxu0 0.0
    %173 = vmatpush1.msra.mxu0 0.0
    %174 = vmatprep.subr.mxu0 0.0
    %175 = vmatpush1.msra.mxu0 0.0
    %176 = vmatprep.subr.mxu0 0.0
    %177 = vmatpush1.msra.mxu0 0.0
    %178 = vmatprep.subr.mxu0 0.0
    %179 = vmatpush1.msra.mxu0 0.0
    %180 = vmatprep.subr.mxu0 0.0
    %181 = vmatpush1.msra.mxu0 0.0
    %182 = vmatprep.subr.mxu0 0.0
    %183 = vmatpush1.msra.mxu0 0.0
    %184 = vmatprep.subr.mxu0 0.0
    %185 = vmatpush1.msra.mxu0 %v152
    %186 = vmatprep.subr.mxu0 0.0
    %187 = vmatpush2.msra.mxu0 0.0
    %188 = vmatprep.subr.mxu0 0.0
    %189 = vmatpush2.msra.mxu0 0.0
    %190 = vmatprep.subr.mxu0 0.0
    %191 = vmatpush2.msra.mxu0 0.0
    %192 = vmatprep.subr.mxu0 0.0
    %193 = vmatpush2.msra.mxu0 0.0
    %194 = vmatprep.subr.mxu0 0.0
    %195 = vmatpush2.msra.mxu0 0.0
    %196 = vmatprep.subr.mxu0 0.0
    %197 = vmatpush2.msra.mxu0 0.0
    %198 = vmatprep.subr.mxu0 0.0
    %199 = vmatpush2.msra.mxu0 0.0
    %200 = vmatprep.subr.mxu0 0.0
    %201 = vmatpush2.msra.mxu0 0.0
    %202 = vmatprep.subr.mxu0 0.0
    %203 = vmatpush2.msra.mxu0 0.0
    %204 = vmatprep.subr.mxu0 0.0
    %205 = vmatpush2.msra.mxu0 0.0
    %206 = vmatprep.subr.mxu0 0.0
    %207 = vmatpush2.msra.mxu0 0.0
    %208 = vmatprep.subr.mxu0 0.0
    %209 = vmatpush2.msra.mxu0 0.0
    %210 = vmatprep.subr.mxu0 0.0
    %211 = vmatpush2.msra.mxu0 0.0
    %212 = vmatprep.subr.mxu0 0.0
    %213 = vmatpush2.msra.mxu0 0.0
    %214 = vmatprep.subr.mxu0 0.0
    %215 = vmatpush2.msra.mxu0 0.0
    %216 = vmatprep.subr.mxu0 0.0
    %217 = vmatpush2.msra.mxu0 0.0
    %218 = vmatprep.mubr.f32.mxu0 0.0
    %219 = vmatmul.mubr.f32.gmra.mxu0 %v149
    %v220 = vpop.f32.mrf.mxu0
    %v221 = vadd.f32 0.0, %v220
    %v222 = vpop.f32.mrf.mxu0
    %223 = vdwg.mxu0
    %vm224 = vcmp.gt.f32.partialorder %v221, 0.0
    %v225 = vmul.f32 %v221, 0.2
    %v226 = vsel %vm224, %v221, %v225
    %v228 = vsel %vm73, %v226, 0
    %230 = vmatprep.subr.mxu0 0.0
    %231 = vmatpush1.msra.mxu0 0.0
    %232 = vmatprep.subr.mxu0 0.0
    %233 = vmatpush1.msra.mxu0 0.0
    %234 = vmatprep.subr.mxu0 0.0
    %235 = vmatpush1.msra.mxu0 0.0
    %236 = vmatprep.subr.mxu0 0.0
    %237 = vmatpush1.msra.mxu0 0.0
    %238 = vmatprep.subr.mxu0 0.0
    %239 = vmatpush1.msra.mxu0 0.0
    %240 = vmatprep.subr.mxu0 0.0
    %241 = vmatpush1.msra.mxu0 0.0
    %242 = vmatprep.subr.mxu0 0.0
    %243 = vmatpush1.msra.mxu0 0.0
    %244 = vmatprep.subr.mxu0 0.0
    %245 = vmatpush1.msra.mxu0 0.0
    %246 = vmatprep.subr.mxu0 0.0
    %247 = vmatpush1.msra.mxu0 0.0
    %248 = vmatprep.subr.mxu0 0.0
    %249 = vmatpush1.msra.mxu0 0.0
    %250 = vmatprep.subr.mxu0 0.0
    %251 = vmatpush1.msra.mxu0 0.0
    %252 = vmatprep.subr.mxu0 0.0
    %253 = vmatpush1.msra.mxu0 0.0
    %254 = vmatprep.subr.mxu0 0.0
    %255 = vmatpush1.msra.mxu0 0.0
    %256 = vmatprep.subr.mxu0 0.0
    %257 = vmatpush1.msra.mxu0 0.0
    %258 = vmatprep.subr.mxu0 0.0
    %259 = vmatpush1.msra.mxu0 0.0
    %260 = vmatprep.subr.mxu0 0.0
    %261 = vmatpush1.msra.mxu0 %v228
    %262 = vmatprep.subr.mxu0 0.0
    %263 = vmatpush2.msra.mxu0 0.0
    %264 = vmatprep.subr.mxu0 0.0
    %265 = vmatpush2.msra.mxu0 0.0
    %266 = vmatprep.subr.mxu0 0.0
    %267 = vmatpush2.msra.mxu0 0.0
    %268 = vmatprep.subr.mxu0 0.0
    %269 = vmatpush2.msra.mxu0 0.0
    %270 = vmatprep.subr.mxu0 0.0
    %271 = vmatpush2.msra.mxu0 0.0
    %272 = vmatprep.subr.mxu0 0.0
    %273 = vmatpush2.msra.mxu0 0.0
    %274 = vmatprep.subr.mxu0 0.0
    %275 = vmatpush2.msra.mxu0 0.0
    %276 = vmatprep.subr.mxu0 0.0
    %277 = vmatpush2.msra.mxu0 0.0
    %278 = vmatprep.subr.mxu0 0.0
    %279 = vmatpush2.msra.mxu0 0.0
    %280 = vmatprep.subr.mxu0 0.0
    %281 = vmatpush2.msra.mxu0 0.0
    %282 = vmatprep.subr.mxu0 0.0
    %283 = vmatpush2.msra.mxu0 0.0
    %284 = vmatprep.subr.mxu0 0.0
    %285 = vmatpush2.msra.mxu0 0.0
    %286 = vmatprep.subr.mxu0 0.0
    %287 = vmatpush2.msra.mxu0 0.0
    %288 = vmatprep.subr.mxu0 0.0
    %289 = vmatpush2.msra.mxu0 0.0
    %290 = vmatprep.subr.mxu0 0.0
    %291 = vmatpush2.msra.mxu0 0.0
    %292 = vmatprep.subr.mxu0 0.0
    %293 = vmatpush2.msra.mxu0 0.0
    %294 = vmatprep.mubr.f32.mxu0 0.0
    %295 = vmatmul.mubr.f32.gmra.mxu0 %v149
    %v296 = vpop.f32.mrf.mxu0
    %v297 = vadd.f32 0.0, %v296
    %v298 = vpop.f32.mrf.mxu0
    %299 = vdwg.mxu0
    %v300 = vld [vmem:[#allocation8] sm:$0xff]
    %v301 = vld [vmem:[#allocation8 + $0x8] sm:$0xff]
    %v302 = vld [vmem:[#allocation8 + $0x10] sm:$0xff]
    %v303 = vld [vmem:[#allocation8 + $0x18] sm:$0xff]
    %v304 = vld [vmem:[#allocation8 + $0x20] sm:$0xff]
    %v305 = vld [vmem:[#allocation8 + $0x28] sm:$0xff]
    %v306 = vld [vmem:[#allocation8 + $0x30] sm:$0xff]
    %v307 = vld [vmem:[#allocation8 + $0x38] sm:$0xff]
    %v308 = vld [vmem:[#allocation8 + $0x40] sm:$0xff]
    %v309 = vld [vmem:[#allocation8 + $0x48] sm:$0xff]
    %v310 = vld [vmem:[#allocation8 + $0x50] sm:$0xff]
    %v311 = vld [vmem:[#allocation8 + $0x58] sm:$0xff]
    %v312 = vld [vmem:[#allocation8 + $0x60] sm:$0xff]
    %v313 = vld [vmem:[#allocation8 + $0x68] sm:$0xff]
    %v314 = vld [vmem:[#allocation8 + $0x70] sm:$0xff]
    %v315 = vld [vmem:[#allocation8 + $0x78] sm:$0xff]
    %v316 = vld [vmem:[#allocation8 + $0x80] sm:$0xff]
    %v317 = vld [vmem:[#allocation8 + $0x88] sm:$0xff]
    %v318 = vld [vmem:[#allocation8 + $0x90] sm:$0xff]
    %v319 = vld [vmem:[#allocation8 + $0x98] sm:$0xff]
    %v320 = vld [vmem:[#allocation8 + $0xa0] sm:$0xff]
    %v321 = vld [vmem:[#allocation8 + $0xa8] sm:$0xff]
    %v322 = vld [vmem:[#allocation8 + $0xb0] sm:$0xff]
    %v323 = vld [vmem:[#allocation8 + $0xb8] sm:$0xff]
    %v324 = vld [vmem:[#allocation8 + $0xc0] sm:$0xff]
    %v325 = vld [vmem:[#allocation8 + $0xc8] sm:$0xff]
    %v326 = vld [vmem:[#allocation8 + $0xd0] sm:$0xff]
    %v327 = vld [vmem:[#allocation8 + $0xd8] sm:$0xff]
    %v328 = vld [vmem:[#allocation8 + $0xe0] sm:$0xff]
    %v329 = vld [vmem:[#allocation8 + $0xe8] sm:$0xff]
    %v330 = vld [vmem:[#allocation8 + $0xf0] sm:$0xff]
    %v331 = vld [vmem:[#allocation8 + $0xf8] sm:$0xff]
    %v332 = vld [vmem:[#allocation8 + $0x100] sm:$0xff]
    %v333 = vld [vmem:[#allocation8 + $0x108] sm:$0xff]
    %v334 = vld [vmem:[#allocation8 + $0x110] sm:$0xff]
    %v335 = vld [vmem:[#allocation8 + $0x118] sm:$0xff]
    %v336 = vld [vmem:[#allocation8 + $0x120] sm:$0xff]
    %v337 = vld [vmem:[#allocation8 + $0x128] sm:$0xff]
    %v338 = vld [vmem:[#allocation8 + $0x130] sm:$0xff]
    %v339 = vld [vmem:[#allocation8 + $0x138] sm:$0xff]
    %v340 = vld [vmem:[#allocation8 + $0x140] sm:$0xff]
    %v341 = vld [vmem:[#allocation8 + $0x148] sm:$0xff]
    %v342 = vld [vmem:[#allocation8 + $0x150] sm:$0xff]
    %v343 = vld [vmem:[#allocation8 + $0x158] sm:$0xff]
    %v344 = vld [vmem:[#allocation8 + $0x160] sm:$0xff]
    %v345 = vld [vmem:[#allocation8 + $0x168] sm:$0xff]
    %v346 = vld [vmem:[#allocation8 + $0x170] sm:$0xff]
    %v347 = vld [vmem:[#allocation8 + $0x178] sm:$0xff]
    %v348 = vld [vmem:[#allocation8 + $0x180] sm:$0xff]
    %v349 = vld [vmem:[#allocation8 + $0x188] sm:$0xff]
    %v350 = vld [vmem:[#allocation8 + $0x190] sm:$0xff]
    %v351 = vld [vmem:[#allocation8 + $0x198] sm:$0xff]
    %v352 = vld [vmem:[#allocation8 + $0x1a0] sm:$0xff]
    %v353 = vld [vmem:[#allocation8 + $0x1a8] sm:$0xff]
    %v354 = vld [vmem:[#allocation8 + $0x1b0] sm:$0xff]
    %v355 = vld [vmem:[#allocation8 + $0x1b8] sm:$0xff]
    %v356 = vld [vmem:[#allocation8 + $0x1c0] sm:$0xff]
    %v357 = vld [vmem:[#allocation8 + $0x1c8] sm:$0xff]
    %v358 = vld [vmem:[#allocation8 + $0x1d0] sm:$0xff]
    %v359 = vld [vmem:[#allocation8 + $0x1d8] sm:$0xff]
    %v360 = vld [vmem:[#allocation8 + $0x1e0] sm:$0xff]
    %v361 = vld [vmem:[#allocation8 + $0x1e8] sm:$0xff]
    %v362 = vld [vmem:[#allocation8 + $0x1f0] sm:$0xff]
    %v363 = vld [vmem:[#allocation8 + $0x1f8] sm:$0xff]
    %v364 = vld [vmem:[#allocation8 + $0x200] sm:$0xff]
    %v365 = vld [vmem:[#allocation8 + $0x208] sm:$0xff]
    %v366 = vld [vmem:[#allocation8 + $0x210] sm:$0xff]
    %v367 = vld [vmem:[#allocation8 + $0x218] sm:$0xff]
    %v368 = vld [vmem:[#allocation8 + $0x220] sm:$0xff]
    %v369 = vld [vmem:[#allocation8 + $0x228] sm:$0xff]
    %v370 = vld [vmem:[#allocation8 + $0x230] sm:$0xff]
    %v371 = vld [vmem:[#allocation8 + $0x238] sm:$0xff]
    %v372 = vld [vmem:[#allocation8 + $0x240] sm:$0xff]
    %v373 = vld [vmem:[#allocation8 + $0x248] sm:$0xff]
    %v374 = vld [vmem:[#allocation8 + $0x250] sm:$0xff]
    %v375 = vld [vmem:[#allocation8 + $0x258] sm:$0xff]
    %v376 = vld [vmem:[#allocation8 + $0x260] sm:$0xff]
    %v377 = vld [vmem:[#allocation8 + $0x268] sm:$0xff]
    %v378 = vld [vmem:[#allocation8 + $0x270] sm:$0xff]
    %v379 = vld [vmem:[#allocation8 + $0x278] sm:$0xff]
    %v380 = vld [vmem:[#allocation8 + $0x280] sm:$0xff]
    %v381 = vld [vmem:[#allocation8 + $0x288] sm:$0xff]
    %v382 = vld [vmem:[#allocation8 + $0x290] sm:$0xff]
    %v383 = vld [vmem:[#allocation8 + $0x298] sm:$0xff]
    %v384 = vld [vmem:[#allocation8 + $0x2a0] sm:$0xff]
    %v385 = vld [vmem:[#allocation8 + $0x2a8] sm:$0xff]
    %v386 = vld [vmem:[#allocation8 + $0x2b0] sm:$0xff]
    %v387 = vld [vmem:[#allocation8 + $0x2b8] sm:$0xff]
    %v388 = vld [vmem:[#allocation8 + $0x2c0] sm:$0xff]
    %v389 = vld [vmem:[#allocation8 + $0x2c8] sm:$0xff]
    %v390 = vld [vmem:[#allocation8 + $0x2d0] sm:$0xff]
    %v391 = vld [vmem:[#allocation8 + $0x2d8] sm:$0xff]
    %v392 = vld [vmem:[#allocation8 + $0x2e0] sm:$0xff]
    %v393 = vld [vmem:[#allocation8 + $0x2e8] sm:$0xff]
    %v394 = vld [vmem:[#allocation8 + $0x2f0] sm:$0xff]
    %v395 = vld [vmem:[#allocation8 + $0x2f8] sm:$0xff]
    %v396 = vld [vmem:[#allocation8 + $0x300] sm:$0xff]
    %v397 = vld [vmem:[#allocation8 + $0x308] sm:$0xff]
    %v398 = vld [vmem:[#allocation8 + $0x310] sm:$0xff]
    %v399 = vld [vmem:[#allocation8 + $0x318] sm:$0xff]
    %v400 = vld [vmem:[#allocation8 + $0x320] sm:$0xff]
    %v401 = vld [vmem:[#allocation8 + $0x328] sm:$0xff]
    %v402 = vld [vmem:[#allocation8 + $0x330] sm:$0xff]
    %v403 = vld [vmem:[#allocation8 + $0x338] sm:$0xff]
    %v404 = vld [vmem:[#allocation8 + $0x340] sm:$0xff]
    %v405 = vld [vmem:[#allocation8 + $0x348] sm:$0xff]
    %v406 = vld [vmem:[#allocation8 + $0x350] sm:$0xff]
    %v407 = vld [vmem:[#allocation8 + $0x358] sm:$0xff]
    %v408 = vld [vmem:[#allocation8 + $0x360] sm:$0xff]
    %v409 = vld [vmem:[#allocation8 + $0x368] sm:$0xff]
    %v410 = vld [vmem:[#allocation8 + $0x370] sm:$0xff]
    %v411 = vld [vmem:[#allocation8 + $0x378] sm:$0xff]
    %v412 = vld [vmem:[#allocation8 + $0x380] sm:$0xff]
    %v413 = vld [vmem:[#allocation8 + $0x388] sm:$0xff]
    %v414 = vld [vmem:[#allocation8 + $0x390] sm:$0xff]
    %v415 = vld [vmem:[#allocation8 + $0x398] sm:$0xff]
    %v416 = vld [vmem:[#allocation8 + $0x3a0] sm:$0xff]
    %v417 = vld [vmem:[#allocation8 + $0x3a8] sm:$0xff]
    %v418 = vld [vmem:[#allocation8 + $0x3b0] sm:$0xff]
    %v419 = vld [vmem:[#allocation8 + $0x3b8] sm:$0xff]
    %v420 = vld [vmem:[#allocation8 + $0x3c0] sm:$0xff]
    %v421 = vld [vmem:[#allocation8 + $0x3c8] sm:$0xff]
    %v422 = vld [vmem:[#allocation8 + $0x3d0] sm:$0xff]
    %v423 = vld [vmem:[#allocation8 + $0x3d8] sm:$0xff]
    %v424 = vld [vmem:[#allocation8 + $0x3e0] sm:$0xff]
    %v425 = vld [vmem:[#allocation8 + $0x3e8] sm:$0xff]
    %v426 = vld [vmem:[#allocation8 + $0x3f0] sm:$0xff]
    %v427 = vld [vmem:[#allocation8 + $0x3f8] sm:$0xff]
    %v428 = vld [vmem:[#allocation8 + $0x400] sm:$0xff]
    %v429 = vld [vmem:[#allocation8 + $0x408] sm:$0xff]
    %v430 = vld [vmem:[#allocation8 + $0x410] sm:$0xff]
    %v431 = vld [vmem:[#allocation8 + $0x418] sm:$0xff]
    %v432 = vld [vmem:[#allocation8 + $0x420] sm:$0xff]
    %v433 = vld [vmem:[#allocation8 + $0x428] sm:$0xff]
    %v434 = vld [vmem:[#allocation8 + $0x430] sm:$0xff]
    %v435 = vld [vmem:[#allocation8 + $0x438] sm:$0xff]
    %v436 = vld [vmem:[#allocation8 + $0x440] sm:$0xff]
    %v437 = vld [vmem:[#allocation8 + $0x448] sm:$0xff]
    %v438 = vld [vmem:[#allocation8 + $0x450] sm:$0xff]
    %v439 = vld [vmem:[#allocation8 + $0x458] sm:$0xff]
    %v440 = vld [vmem:[#allocation8 + $0x460] sm:$0xff]
    %v441 = vld [vmem:[#allocation8 + $0x468] sm:$0xff]
    %v442 = vld [vmem:[#allocation8 + $0x470] sm:$0xff]
    %v443 = vld [vmem:[#allocation8 + $0x478] sm:$0xff]
    %v444 = vld [vmem:[#allocation8 + $0x480] sm:$0xff]
    %v445 = vld [vmem:[#allocation8 + $0x488] sm:$0xff]
    %v446 = vld [vmem:[#allocation8 + $0x490] sm:$0xff]
    %v447 = vld [vmem:[#allocation8 + $0x498] sm:$0xff]
    %v448 = vld [vmem:[#allocation8 + $0x4a0] sm:$0xff]
    %v449 = vld [vmem:[#allocation8 + $0x4a8] sm:$0xff]
    %v450 = vld [vmem:[#allocation8 + $0x4b0] sm:$0xff]
    %v451 = vld [vmem:[#allocation8 + $0x4b8] sm:$0xff]
    %v452 = vld [vmem:[#allocation8 + $0x4c0] sm:$0xff]
    %v453 = vld [vmem:[#allocation8 + $0x4c8] sm:$0xff]
    %v454 = vld [vmem:[#allocation8 + $0x4d0] sm:$0xff]
    %v455 = vld [vmem:[#allocation8 + $0x4d8] sm:$0xff]
    %v456 = vld [vmem:[#allocation8 + $0x4e0] sm:$0xff]
    %v457 = vld [vmem:[#allocation8 + $0x4e8] sm:$0xff]
    %v458 = vld [vmem:[#allocation8 + $0x4f0] sm:$0xff]
    %v459 = vld [vmem:[#allocation8 + $0x4f8] sm:$0xff]
    %v460 = vld [vmem:[#allocation8 + $0x500] sm:$0xff]
    %v461 = vld [vmem:[#allocation8 + $0x508] sm:$0xff]
    %v462 = vld [vmem:[#allocation8 + $0x510] sm:$0xff]
    %v463 = vld [vmem:[#allocation8 + $0x518] sm:$0xff]
    %v464 = vld [vmem:[#allocation8 + $0x520] sm:$0xff]
    %v465 = vld [vmem:[#allocation8 + $0x528] sm:$0xff]
    %v466 = vld [vmem:[#allocation8 + $0x530] sm:$0xff]
    %v467 = vld [vmem:[#allocation8 + $0x538] sm:$0xff]
    %v468 = vld [vmem:[#allocation8 + $0x540] sm:$0xff]
    %v469 = vld [vmem:[#allocation8 + $0x548] sm:$0xff]
    %v470 = vld [vmem:[#allocation8 + $0x550] sm:$0xff]
    %v471 = vld [vmem:[#allocation8 + $0x558] sm:$0xff]
    %v472 = vld [vmem:[#allocation8 + $0x560] sm:$0xff]
    %v473 = vld [vmem:[#allocation8 + $0x568] sm:$0xff]
    %v474 = vld [vmem:[#allocation8 + $0x570] sm:$0xff]
    %v475 = vld [vmem:[#allocation8 + $0x578] sm:$0xff]
    %v476 = vld [vmem:[#allocation8 + $0x580] sm:$0xff]
    %v477 = vld [vmem:[#allocation8 + $0x588] sm:$0xff]
    %v478 = vld [vmem:[#allocation8 + $0x590] sm:$0xff]
    %v479 = vld [vmem:[#allocation8 + $0x598] sm:$0xff]
    %v480 = vld [vmem:[#allocation8 + $0x5a0] sm:$0xff]
    %v481 = vld [vmem:[#allocation8 + $0x5a8] sm:$0xff]
    %v482 = vld [vmem:[#allocation8 + $0x5b0] sm:$0xff]
    %v483 = vld [vmem:[#allocation8 + $0x5b8] sm:$0xff]
    %v484 = vld [vmem:[#allocation8 + $0x5c0] sm:$0xff]
    %v485 = vld [vmem:[#allocation8 + $0x5c8] sm:$0xff]
    %v486 = vld [vmem:[#allocation8 + $0x5d0] sm:$0xff]
    %v487 = vld [vmem:[#allocation8 + $0x5d8] sm:$0xff]
    %v488 = vld [vmem:[#allocation8 + $0x5e0] sm:$0xff]
    %v489 = vld [vmem:[#allocation8 + $0x5e8] sm:$0xff]
    %v490 = vld [vmem:[#allocation8 + $0x5f0] sm:$0xff]
    %v491 = vld [vmem:[#allocation8 + $0x5f8] sm:$0xff]
    %v492 = vld [vmem:[#allocation8 + $0x600] sm:$0xff]
    %v493 = vld [vmem:[#allocation8 + $0x608] sm:$0xff]
    %v494 = vld [vmem:[#allocation8 + $0x610] sm:$0xff]
    %v495 = vld [vmem:[#allocation8 + $0x618] sm:$0xff]
    %v496 = vld [vmem:[#allocation8 + $0x620] sm:$0xff]
    %v497 = vld [vmem:[#allocation8 + $0x628] sm:$0xff]
    %v498 = vld [vmem:[#allocation8 + $0x630] sm:$0xff]
    %v499 = vld [vmem:[#allocation8 + $0x638] sm:$0xff]
    %v500 = vld [vmem:[#allocation8 + $0x640] sm:$0xff]
    %v501 = vld [vmem:[#allocation8 + $0x648] sm:$0xff]
    %v502 = vld [vmem:[#allocation8 + $0x650] sm:$0xff]
    %v503 = vld [vmem:[#allocation8 + $0x658] sm:$0xff]
    %v504 = vld [vmem:[#allocation8 + $0x660] sm:$0xff]
    %v505 = vld [vmem:[#allocation8 + $0x668] sm:$0xff]
    %v506 = vld [vmem:[#allocation8 + $0x670] sm:$0xff]
    %v507 = vld [vmem:[#allocation8 + $0x678] sm:$0xff]
    %v508 = vld [vmem:[#allocation8 + $0x680] sm:$0xff]
    %v509 = vld [vmem:[#allocation8 + $0x688] sm:$0xff]
    %v510 = vld [vmem:[#allocation8 + $0x690] sm:$0xff]
    %v511 = vld [vmem:[#allocation8 + $0x698] sm:$0xff]
    %v512 = vld [vmem:[#allocation8 + $0x6a0] sm:$0xff]
    %v513 = vld [vmem:[#allocation8 + $0x6a8] sm:$0xff]
    %v514 = vld [vmem:[#allocation8 + $0x6b0] sm:$0xff]
    %v515 = vld [vmem:[#allocation8 + $0x6b8] sm:$0xff]
    %v516 = vld [vmem:[#allocation8 + $0x6c0] sm:$0xff]
    %v517 = vld [vmem:[#allocation8 + $0x6c8] sm:$0xff]
    %v518 = vld [vmem:[#allocation8 + $0x6d0] sm:$0xff]
    %v519 = vld [vmem:[#allocation8 + $0x6d8] sm:$0xff]
    %v520 = vld [vmem:[#allocation8 + $0x6e0] sm:$0xff]
    %v521 = vld [vmem:[#allocation8 + $0x6e8] sm:$0xff]
    %v522 = vld [vmem:[#allocation8 + $0x6f0] sm:$0xff]
    %v523 = vld [vmem:[#allocation8 + $0x6f8] sm:$0xff]
    %v524 = vld [vmem:[#allocation8 + $0x700] sm:$0xff]
    %v525 = vld [vmem:[#allocation8 + $0x708] sm:$0xff]
    %v526 = vld [vmem:[#allocation8 + $0x710] sm:$0xff]
    %v527 = vld [vmem:[#allocation8 + $0x718] sm:$0xff]
    %v528 = vld [vmem:[#allocation8 + $0x720] sm:$0xff]
    %v529 = vld [vmem:[#allocation8 + $0x728] sm:$0xff]
    %v530 = vld [vmem:[#allocation8 + $0x730] sm:$0xff]
    %v531 = vld [vmem:[#allocation8 + $0x738] sm:$0xff]
    %v532 = vld [vmem:[#allocation8 + $0x740] sm:$0xff]
    %v533 = vld [vmem:[#allocation8 + $0x748] sm:$0xff]
    %v534 = vld [vmem:[#allocation8 + $0x750] sm:$0xff]
    %v535 = vld [vmem:[#allocation8 + $0x758] sm:$0xff]
    %v536 = vld [vmem:[#allocation8 + $0x760] sm:$0xff]
    %v537 = vld [vmem:[#allocation8 + $0x768] sm:$0xff]
    %v538 = vld [vmem:[#allocation8 + $0x770] sm:$0xff]
    %v539 = vld [vmem:[#allocation8 + $0x778] sm:$0xff]
    %v540 = vld [vmem:[#allocation8 + $0x780] sm:$0xff]
    %v541 = vld [vmem:[#allocation8 + $0x788] sm:$0xff]
    %v542 = vld [vmem:[#allocation8 + $0x790] sm:$0xff]
    %v543 = vld [vmem:[#allocation8 + $0x798] sm:$0xff]
    %v544 = vld [vmem:[#allocation8 + $0x7a0] sm:$0xff]
    %v545 = vld [vmem:[#allocation8 + $0x7a8] sm:$0xff]
    %v546 = vld [vmem:[#allocation8 + $0x7b0] sm:$0xff]
    %v547 = vld [vmem:[#allocation8 + $0x7b8] sm:$0xff]
    %v548 = vld [vmem:[#allocation8 + $0x7c0] sm:$0xff]
    %v549 = vld [vmem:[#allocation8 + $0x7c8] sm:$0xff]
    %v550 = vld [vmem:[#allocation8 + $0x7d0] sm:$0xff]
    %v551 = vld [vmem:[#allocation8 + $0x7d8] sm:$0xff]
    %v552 = vld [vmem:[#allocation8 + $0x7e0] sm:$0xff]
    %v553 = vld [vmem:[#allocation8 + $0x7e8] sm:$0xff]
    %v554 = vld [vmem:[#allocation8 + $0x7f0] sm:$0xff]
    %v555 = vld [vmem:[#allocation8 + $0x7f8] sm:$0xff]
    %v556 = vld [vmem:[#allocation8 + $0x800] sm:$0xff]
    %v557 = vld [vmem:[#allocation8 + $0x808] sm:$0xff]
    %v558 = vld [vmem:[#allocation8 + $0x810] sm:$0xff]
    %v559 = vld [vmem:[#allocation8 + $0x818] sm:$0xff]
    %v560 = vld [vmem:[#allocation8 + $0x820] sm:$0xff]
    %v561 = vld [vmem:[#allocation8 + $0x828] sm:$0xff]
    %v562 = vld [vmem:[#allocation8 + $0x830] sm:$0xff]
    %v563 = vld [vmem:[#allocation8 + $0x838] sm:$0xff]
    %v564 = vld [vmem:[#allocation8 + $0x840] sm:$0xff]
    %v565 = vld [vmem:[#allocation8 + $0x848] sm:$0xff]
    %v566 = vld [vmem:[#allocation8 + $0x850] sm:$0xff]
    %v567 = vld [vmem:[#allocation8 + $0x858] sm:$0xff]
    %v568 = vld [vmem:[#allocation8 + $0x860] sm:$0xff]
    %v569 = vld [vmem:[#allocation8 + $0x868] sm:$0xff]
    %v570 = vld [vmem:[#allocation8 + $0x870] sm:$0xff]
    %v571 = vld [vmem:[#allocation8 + $0x878] sm:$0xff]
    %v572 = vld [vmem:[#allocation8 + $0x880] sm:$0xff]
    %v573 = vld [vmem:[#allocation8 + $0x888] sm:$0xff]
    %v574 = vld [vmem:[#allocation8 + $0x890] sm:$0xff]
    %v575 = vld [vmem:[#allocation8 + $0x898] sm:$0xff]
    %v576 = vld [vmem:[#allocation8 + $0x8a0] sm:$0xff]
    %v577 = vld [vmem:[#allocation8 + $0x8a8] sm:$0xff]
    %v578 = vld [vmem:[#allocation8 + $0x8b0] sm:$0xff]
    %v579 = vld [vmem:[#allocation8 + $0x8b8] sm:$0xff]
    %v580 = vld [vmem:[#allocation8 + $0x8c0] sm:$0xff]
    %v581 = vld [vmem:[#allocation8 + $0x8c8] sm:$0xff]
    %v582 = vld [vmem:[#allocation8 + $0x8d0] sm:$0xff]
    %v583 = vld [vmem:[#allocation8 + $0x8d8] sm:$0xff]
    %v584 = vld [vmem:[#allocation8 + $0x8e0] sm:$0xff]
    %v585 = vld [vmem:[#allocation8 + $0x8e8] sm:$0xff]
    %v586 = vld [vmem:[#allocation8 + $0x8f0] sm:$0xff]
    %v587 = vld [vmem:[#allocation8 + $0x8f8] sm:$0xff]
    %v588 = vld [vmem:[#allocation8 + $0x900] sm:$0xff]
    %v589 = vld [vmem:[#allocation8 + $0x908] sm:$0xff]
    %v590 = vld [vmem:[#allocation8 + $0x910] sm:$0xff]
    %v591 = vld [vmem:[#allocation8 + $0x918] sm:$0xff]
    %v592 = vld [vmem:[#allocation8 + $0x920] sm:$0xff]
    %v593 = vld [vmem:[#allocation8 + $0x928] sm:$0xff]
    %v594 = vld [vmem:[#allocation8 + $0x930] sm:$0xff]
    %v595 = vld [vmem:[#allocation8 + $0x938] sm:$0xff]
    %v596 = vld [vmem:[#allocation8 + $0x940] sm:$0xff]
    %v597 = vld [vmem:[#allocation8 + $0x948] sm:$0xff]
    %v598 = vld [vmem:[#allocation8 + $0x950] sm:$0xff]
    %v599 = vld [vmem:[#allocation8 + $0x958] sm:$0xff]
    %v600 = vld [vmem:[#allocation8 + $0x960] sm:$0xff]
    %v601 = vld [vmem:[#allocation8 + $0x968] sm:$0xff]
    %v602 = vld [vmem:[#allocation8 + $0x970] sm:$0xff]
    %v603 = vld [vmem:[#allocation8 + $0x978] sm:$0xff]
    %v604 = vld [vmem:[#allocation8 + $0x980] sm:$0xff]
    %v605 = vld [vmem:[#allocation8 + $0x988] sm:$0xff]
    %v606 = vld [vmem:[#allocation8 + $0x990] sm:$0xff]
    %v607 = vld [vmem:[#allocation8 + $0x998] sm:$0xff]
    %v608 = vld [vmem:[#allocation8 + $0x9a0] sm:$0xff]
    %v609 = vld [vmem:[#allocation8 + $0x9a8] sm:$0xff]
    %v610 = vld [vmem:[#allocation8 + $0x9b0] sm:$0xff]
    %v611 = vld [vmem:[#allocation8 + $0x9b8] sm:$0xff]
    %v612 = vld [vmem:[#allocation8 + $0x9c0] sm:$0xff]
    %v613 = vld [vmem:[#allocation8 + $0x9c8] sm:$0xff]
    %v614 = vld [vmem:[#allocation8 + $0x9d0] sm:$0xff]
    %v615 = vld [vmem:[#allocation8 + $0x9d8] sm:$0xff]
    %v616 = vld [vmem:[#allocation8 + $0x9e0] sm:$0xff]
    %v617 = vld [vmem:[#allocation8 + $0x9e8] sm:$0xff]
    %v618 = vld [vmem:[#allocation8 + $0x9f0] sm:$0xff]
    %v619 = vld [vmem:[#allocation8 + $0x9f8] sm:$0xff]
    %v620 = vld [vmem:[#allocation8 + $0xa00] sm:$0xff]
    %v621 = vld [vmem:[#allocation8 + $0xa08] sm:$0xff]
    %v622 = vld [vmem:[#allocation8 + $0xa10] sm:$0xff]
    %v623 = vld [vmem:[#allocation8 + $0xa18] sm:$0xff]
    %v624 = vld [vmem:[#allocation8 + $0xa20] sm:$0xff]
    %v625 = vld [vmem:[#allocation8 + $0xa28] sm:$0xff]
    %v626 = vld [vmem:[#allocation8 + $0xa30] sm:$0xff]
    %v627 = vld [vmem:[#allocation8 + $0xa38] sm:$0xff]
    %v628 = vld [vmem:[#allocation8 + $0xa40] sm:$0xff]
    %v629 = vld [vmem:[#allocation8 + $0xa48] sm:$0xff]
    %v630 = vld [vmem:[#allocation8 + $0xa50] sm:$0xff]
    %v631 = vld [vmem:[#allocation8 + $0xa58] sm:$0xff]
    %v632 = vld [vmem:[#allocation8 + $0xa60] sm:$0xff]
    %v633 = vld [vmem:[#allocation8 + $0xa68] sm:$0xff]
    %v634 = vld [vmem:[#allocation8 + $0xa70] sm:$0xff]
    %v635 = vld [vmem:[#allocation8 + $0xa78] sm:$0xff]
    %v636 = vld [vmem:[#allocation8 + $0xa80] sm:$0xff]
    %v637 = vld [vmem:[#allocation8 + $0xa88] sm:$0xff]
    %v638 = vld [vmem:[#allocation8 + $0xa90] sm:$0xff]
    %v639 = vld [vmem:[#allocation8 + $0xa98] sm:$0xff]
    %v640 = vld [vmem:[#allocation8 + $0xaa0] sm:$0xff]
    %v641 = vld [vmem:[#allocation8 + $0xaa8] sm:$0xff]
    %v642 = vld [vmem:[#allocation8 + $0xab0] sm:$0xff]
    %v643 = vld [vmem:[#allocation8 + $0xab8] sm:$0xff]
    %v644 = vld [vmem:[#allocation8 + $0xac0] sm:$0xff]
    %v645 = vld [vmem:[#allocation8 + $0xac8] sm:$0xff]
    %v646 = vld [vmem:[#allocation8 + $0xad0] sm:$0xff]
    %v647 = vld [vmem:[#allocation8 + $0xad8] sm:$0xff]
    %v648 = vld [vmem:[#allocation8 + $0xae0] sm:$0xff]
    %v649 = vld [vmem:[#allocation8 + $0xae8] sm:$0xff]
    %v650 = vld [vmem:[#allocation8 + $0xaf0] sm:$0xff]
    %v651 = vld [vmem:[#allocation8 + $0xaf8] sm:$0xff]
    %v652 = vld [vmem:[#allocation8 + $0xb00] sm:$0xff]
    %v653 = vld [vmem:[#allocation8 + $0xb08] sm:$0xff]
    %v654 = vld [vmem:[#allocation8 + $0xb10] sm:$0xff]
    %v655 = vld [vmem:[#allocation8 + $0xb18] sm:$0xff]
    %v656 = vld [vmem:[#allocation8 + $0xb20] sm:$0xff]
    %v657 = vld [vmem:[#allocation8 + $0xb28] sm:$0xff]
    %v658 = vld [vmem:[#allocation8 + $0xb30] sm:$0xff]
    %v659 = vld [vmem:[#allocation8 + $0xb38] sm:$0xff]
    %v660 = vld [vmem:[#allocation8 + $0xb40] sm:$0xff]
    %v661 = vld [vmem:[#allocation8 + $0xb48] sm:$0xff]
    %v662 = vld [vmem:[#allocation8 + $0xb50] sm:$0xff]
    %v663 = vld [vmem:[#allocation8 + $0xb58] sm:$0xff]
    %v664 = vld [vmem:[#allocation8 + $0xb60] sm:$0xff]
    %v665 = vld [vmem:[#allocation8 + $0xb68] sm:$0xff]
    %v666 = vld [vmem:[#allocation8 + $0xb70] sm:$0xff]
    %v667 = vld [vmem:[#allocation8 + $0xb78] sm:$0xff]
    %v668 = vld [vmem:[#allocation8 + $0xb80] sm:$0xff]
    %v669 = vld [vmem:[#allocation8 + $0xb88] sm:$0xff]
    %v670 = vld [vmem:[#allocation8 + $0xb90] sm:$0xff]
    %v671 = vld [vmem:[#allocation8 + $0xb98] sm:$0xff]
    %v672 = vld [vmem:[#allocation8 + $0xba0] sm:$0xff]
    %v673 = vld [vmem:[#allocation8 + $0xba8] sm:$0xff]
    %v674 = vld [vmem:[#allocation8 + $0xbb0] sm:$0xff]
    %v675 = vld [vmem:[#allocation8 + $0xbb8] sm:$0xff]
    %v676 = vld [vmem:[#allocation8 + $0xbc0] sm:$0xff]
    %v677 = vld [vmem:[#allocation8 + $0xbc8] sm:$0xff]
    %v678 = vld [vmem:[#allocation8 + $0xbd0] sm:$0xff]
    %v679 = vld [vmem:[#allocation8 + $0xbd8] sm:$0xff]
    %v680 = vld [vmem:[#allocation8 + $0xbe0] sm:$0xff]
    %v681 = vld [vmem:[#allocation8 + $0xbe8] sm:$0xff]
    %v682 = vld [vmem:[#allocation8 + $0xbf0] sm:$0xff]
    %v683 = vld [vmem:[#allocation8 + $0xbf8] sm:$0xff]
    %v684 = vld [vmem:[#allocation8 + $0xc00] sm:$0xff]
    %v685 = vld [vmem:[#allocation8 + $0xc08] sm:$0xff]
    %v686 = vld [vmem:[#allocation8 + $0xc10] sm:$0xff]
    %v687 = vld [vmem:[#allocation8 + $0xc18] sm:$0xff]
    %v688 = vld [vmem:[#allocation8 + $0xc20] sm:$0xff]
    %v689 = vld [vmem:[#allocation8 + $0xc28] sm:$0xff]
    %v690 = vld [vmem:[#allocation8 + $0xc30] sm:$0xff]
    %v691 = vld [vmem:[#allocation8 + $0xc38] sm:$0xff]
    %v692 = vld [vmem:[#allocation8 + $0xc40] sm:$0xff]
    %v693 = vld [vmem:[#allocation8 + $0xc48] sm:$0xff]
    %v694 = vld [vmem:[#allocation8 + $0xc50] sm:$0xff]
    %v695 = vld [vmem:[#allocation8 + $0xc58] sm:$0xff]
    %v696 = vld [vmem:[#allocation8 + $0xc60] sm:$0xff]
    %v697 = vld [vmem:[#allocation8 + $0xc68] sm:$0xff]
    %v698 = vld [vmem:[#allocation8 + $0xc70] sm:$0xff]
    %v699 = vld [vmem:[#allocation8 + $0xc78] sm:$0xff]
    %v700 = vld [vmem:[#allocation8 + $0xc80] sm:$0xff]
    %v701 = vld [vmem:[#allocation8 + $0xc88] sm:$0xff]
    %v702 = vld [vmem:[#allocation8 + $0xc90] sm:$0xff]
    %v703 = vld [vmem:[#allocation8 + $0xc98] sm:$0xff]
    %v704 = vld [vmem:[#allocation8 + $0xca0] sm:$0xff]
    %v705 = vld [vmem:[#allocation8 + $0xca8] sm:$0xff]
    %v706 = vld [vmem:[#allocation8 + $0xcb0] sm:$0xff]
    %v707 = vld [vmem:[#allocation8 + $0xcb8] sm:$0xff]
    %vm708 = vcmask 523264
    %v710 = vsel %vm708, %v297, 0
    %712 = vmatprep.subr.mxu0 0.0
    %713 = vmatpush1.msra.mxu0 0.0
    %714 = vmatprep.subr.mxu0 0.0
    %715 = vmatpush1.msra.mxu0 0.0
    %716 = vmatprep.subr.mxu0 0.0
    %717 = vmatpush1.msra.mxu0 0.0
    %718 = vmatprep.subr.mxu0 0.0
    %719 = vmatpush1.msra.mxu0 0.0
    %720 = vmatprep.subr.mxu0 0.0
    %721 = vmatpush1.msra.mxu0 0.0
    %722 = vmatprep.subr.mxu0 0.0
    %723 = vmatpush1.msra.mxu0 0.0
    %724 = vmatprep.subr.mxu0 0.0
    %725 = vmatpush1.msra.mxu0 0.0
    %726 = vmatprep.subr.mxu0 0.0
    %727 = vmatpush1.msra.mxu0 0.0
    %728 = vmatprep.subr.mxu0 %v658
    %729 = vmatpush1.msra.mxu0 %v657
    %730 = vmatprep.subr.mxu0 %v607
    %731 = vmatpush1.msra.mxu0 %v606
    %732 = vmatprep.subr.mxu0 %v556
    %733 = vmatpush1.msra.mxu0 %v555
    %734 = vmatprep.subr.mxu0 %v505
    %735 = vmatpush1.msra.mxu0 %v504
    %736 = vmatprep.subr.mxu0 %v454
    %737 = vmatpush1.msra.mxu0 %v453
    %738 = vmatprep.subr.mxu0 %v403
    %739 = vmatpush1.msra.mxu0 %v402
    %740 = vmatprep.subr.mxu0 %v352
    %741 = vmatpush1.msra.mxu0 %v351
    %742 = vmatprep.subr.mxu0 %v301
    %743 = vmatpush1.msra.mxu0 %v300
    %744 = vmatprep.subr.mxu0 0.0
    %745 = vmatpush2.msra.mxu0 0.0
    %746 = vmatprep.subr.mxu0 0.0
    %747 = vmatpush2.msra.mxu0 0.0
    %748 = vmatprep.subr.mxu0 0.0
    %749 = vmatpush2.msra.mxu0 0.0
    %750 = vmatprep.subr.mxu0 0.0
    %751 = vmatpush2.msra.mxu0 0.0
    %752 = vmatprep.subr.mxu0 0.0
    %753 = vmatpush2.msra.mxu0 0.0
    %754 = vmatprep.subr.mxu0 0.0
    %755 = vmatpush2.msra.mxu0 0.0
    %756 = vmatprep.subr.mxu0 0.0
    %757 = vmatpush2.msra.mxu0 0.0
    %758 = vmatprep.subr.mxu0 0.0
    %759 = vmatpush2.msra.mxu0 0.0
    %760 = vmatprep.subr.mxu0 0.0
    %761 = vmatpush2.msra.mxu0 0.0
    %762 = vmatprep.subr.mxu0 0.0
    %763 = vmatpush2.msra.mxu0 0.0
    %764 = vmatprep.subr.mxu0 0.0
    %765 = vmatpush2.msra.mxu0 0.0
    %766 = vmatprep.subr.mxu0 0.0
    %767 = vmatpush2.msra.mxu0 0.0
    %768 = vmatprep.subr.mxu0 0.0
    %769 = vmatpush2.msra.mxu0 0.0
    %770 = vmatprep.subr.mxu0 0.0
    %771 = vmatpush2.msra.mxu0 0.0
    %772 = vmatprep.subr.mxu0 0.0
    %773 = vmatpush2.msra.mxu0 0.0
    %774 = vmatprep.subr.mxu0 0.0
    %775 = vmatpush2.msra.mxu0 0.0
    %776 = vmatprep.mubr.f32.mxu0 0.0
    %777 = vmatmul.mubr.f32.gmra.mxu0 %v710
    %v778 = vpop.f32.mrf.mxu0
    %v779 = vadd.f32 0.0, %v778
    %v780 = vpop.f32.mrf.mxu0
    %v781 = vadd.f32 0.0, %v780
    %782 = vdwg.mxu0
    %783 = vmatprep.subr.mxu0 0.0
    %784 = vmatpush1.msra.mxu0 0.0
    %785 = vmatprep.subr.mxu0 0.0
    %786 = vmatpush1.msra.mxu0 0.0
    %787 = vmatprep.subr.mxu0 0.0
    %788 = vmatpush1.msra.mxu0 0.0
    %789 = vmatprep.subr.mxu0 0.0
    %790 = vmatpush1.msra.mxu0 0.0
    %791 = vmatprep.subr.mxu0 0.0
    %792 = vmatpush1.msra.mxu0 0.0
    %793 = vmatprep.subr.mxu0 0.0
    %794 = vmatpush1.msra.mxu0 0.0
    %795 = vmatprep.subr.mxu0 0.0
    %796 = vmatpush1.msra.mxu0 0.0
    %797 = vmatprep.subr.mxu0 0.0
    %798 = vmatpush1.msra.mxu0 0.0
    %799 = vmatprep.subr.mxu0 %v660
    %800 = vmatpush1.msra.mxu0 %v659
    %801 = vmatprep.subr.mxu0 %v609
    %802 = vmatpush1.msra.mxu0 %v608
    %803 = vmatprep.subr.mxu0 %v558
    %804 = vmatpush1.msra.mxu0 %v557
    %805 = vmatprep.subr.mxu0 %v507
    %806 = vmatpush1.msra.mxu0 %v506
    %807 = vmatprep.subr.mxu0 %v456
    %808 = vmatpush1.msra.mxu0 %v455
    %809 = vmatprep.subr.mxu0 %v405
    %810 = vmatpush1.msra.mxu0 %v404
    %811 = vmatprep.subr.mxu0 %v354
    %812 = vmatpush1.msra.mxu0 %v353
    %813 = vmatprep.subr.mxu0 %v303
    %814 = vmatpush1.msra.mxu0 %v302
    %815 = vmatprep.subr.mxu0 0.0
    %816 = vmatpush2.msra.mxu0 0.0
    %817 = vmatprep.subr.mxu0 0.0
    %818 = vmatpush2.msra.mxu0 0.0
    %819 = vmatprep.subr.mxu0 0.0
    %820 = vmatpush2.msra.mxu0 0.0
    %821 = vmatprep.subr.mxu0 0.0
    %822 = vmatpush2.msra.mxu0 0.0
    %823 = vmatprep.subr.mxu0 0.0
    %824 = vmatpush2.msra.mxu0 0.0
    %825 = vmatprep.subr.mxu0 0.0
    %826 = vmatpush2.msra.mxu0 0.0
    %827 = vmatprep.subr.mxu0 0.0
    %828 = vmatpush2.msra.mxu0 0.0
    %829 = vmatprep.subr.mxu0 0.0
    %830 = vmatpush2.msra.mxu0 0.0
    %831 = vmatprep.subr.mxu0 0.0
    %832 = vmatpush2.msra.mxu0 0.0
    %833 = vmatprep.subr.mxu0 0.0
    %834 = vmatpush2.msra.mxu0 0.0
    %835 = vmatprep.subr.mxu0 0.0
    %836 = vmatpush2.msra.mxu0 0.0
    %837 = vmatprep.subr.mxu0 0.0
    %838 = vmatpush2.msra.mxu0 0.0
    %839 = vmatprep.subr.mxu0 0.0
    %840 = vmatpush2.msra.mxu0 0.0
    %841 = vmatprep.subr.mxu0 0.0
    %842 = vmatpush2.msra.mxu0 0.0
    %843 = vmatprep.subr.mxu0 0.0
    %844 = vmatpush2.msra.mxu0 0.0
    %845 = vmatprep.subr.mxu0 0.0
    %846 = vmatpush2.msra.mxu0 0.0
    %847 = vmatprep.mubr.f32.mxu0 0.0
    %848 = vmatmul.mubr.f32.gmra.mxu0 %v710
    %v849 = vpop.f32.mrf.mxu0
    %v850 = vadd.f32 0.0, %v849
    %v851 = vpop.f32.mrf.mxu0
    %v852 = vadd.f32 0.0, %v851
    %853 = vdwg.mxu0
    %854 = vmatprep.subr.mxu0 0.0
    %855 = vmatpush1.msra.mxu0 0.0
    %856 = vmatprep.subr.mxu0 0.0
    %857 = vmatpush1.msra.mxu0 0.0
    %858 = vmatprep.subr.mxu0 0.0
    %859 = vmatpush1.msra.mxu0 0.0
    %860 = vmatprep.subr.mxu0 0.0
    %861 = vmatpush1.msra.mxu0 0.0
    %862 = vmatprep.subr.mxu0 0.0
    %863 = vmatpush1.msra.mxu0 0.0
    %864 = vmatprep.subr.mxu0 0.0
    %865 = vmatpush1.msra.mxu0 0.0
    %866 = vmatprep.subr.mxu0 0.0
    %867 = vmatpush1.msra.mxu0 0.0
    %868 = vmatprep.subr.mxu0 0.0
    %869 = vmatpush1.msra.mxu0 0.0
    %870 = vmatprep.subr.mxu0 %v662
    %871 = vmatpush1.msra.mxu0 %v661
    %872 = vmatprep.subr.mxu0 %v611
    %873 = vmatpush1.msra.mxu0 %v610
    %874 = vmatprep.subr.mxu0 %v560
    %875 = vmatpush1.msra.mxu0 %v559
    %876 = vmatprep.subr.mxu0 %v509
    %877 = vmatpush1.msra.mxu0 %v508
    %878 = vmatprep.subr.mxu0 %v458
    %879 = vmatpush1.msra.mxu0 %v457
    %880 = vmatprep.subr.mxu0 %v407
    %881 = vmatpush1.msra.mxu0 %v406
    %882 = vmatprep.subr.mxu0 %v356
    %883 = vmatpush1.msra.mxu0 %v355
    %884 = vmatprep.subr.mxu0 %v305
    %885 = vmatpush1.msra.mxu0 %v304
    %886 = vmatprep.subr.mxu0 0.0
    %887 = vmatpush2.msra.mxu0 0.0
    %888 = vmatprep.subr.mxu0 0.0
    %889 = vmatpush2.msra.mxu0 0.0
    %890 = vmatprep.subr.mxu0 0.0
    %891 = vmatpush2.msra.mxu0 0.0
    %892 = vmatprep.subr.mxu0 0.0
    %893 = vmatpush2.msra.mxu0 0.0
    %894 = vmatprep.subr.mxu0 0.0
    %895 = vmatpush2.msra.mxu0 0.0
    %896 = vmatprep.subr.mxu0 0.0
    %897 = vmatpush2.msra.mxu0 0.0
    %898 = vmatprep.subr.mxu0 0.0
    %899 = vmatpush2.msra.mxu0 0.0
    %900 = vmatprep.subr.mxu0 0.0
    %901 = vmatpush2.msra.mxu0 0.0
    %902 = vmatprep.subr.mxu0 0.0
    %903 = vmatpush2.msra.mxu0 0.0
    %904 = vmatprep.subr.mxu0 0.0
    %905 = vmatpush2.msra.mxu0 0.0
    %906 = vmatprep.subr.mxu0 0.0
    %907 = vmatpush2.msra.mxu0 0.0
    %908 = vmatprep.subr.mxu0 0.0
    %909 = vmatpush2.msra.mxu0 0.0
    %910 = vmatprep.subr.mxu0 0.0
    %911 = vmatpush2.msra.mxu0 0.0
    %912 = vmatprep.subr.mxu0 0.0
    %913 = vmatpush2.msra.mxu0 0.0
    %914 = vmatprep.subr.mxu0 0.0
    %915 = vmatpush2.msra.mxu0 0.0
    %916 = vmatprep.subr.mxu0 0.0
    %917 = vmatpush2.msra.mxu0 0.0
    %918 = vmatprep.mubr.f32.mxu0 0.0
    %919 = vmatmul.mubr.f32.gmra.mxu0 %v710
    %v920 = vpop.f32.mrf.mxu0
    %v921 = vadd.f32 0.0, %v920
    %v922 = vpop.f32.mrf.mxu0
    %v923 = vadd.f32 0.0, %v922
    %924 = vdwg.mxu0
    %925 = vmatprep.subr.mxu0 0.0
    %926 = vmatpush1.msra.mxu0 0.0
    %927 = vmatprep.subr.mxu0 0.0
    %928 = vmatpush1.msra.mxu0 0.0
    %929 = vmatprep.subr.mxu0 0.0
    %930 = vmatpush1.msra.mxu0 0.0
    %931 = vmatprep.subr.mxu0 0.0
    %932 = vmatpush1.msra.mxu0 0.0
    %933 = vmatprep.subr.mxu0 0.0
    %934 = vmatpush1.msra.mxu0 0.0
    %935 = vmatprep.subr.mxu0 0.0
    %936 = vmatpush1.msra.mxu0 0.0
    %937 = vmatprep.subr.mxu0 0.0
    %938 = vmatpush1.msra.mxu0 0.0
    %939 = vmatprep.subr.mxu0 0.0
    %940 = vmatpush1.msra.mxu0 0.0
    %941 = vmatprep.subr.mxu0 %v664
    %942 = vmatpush1.msra.mxu0 %v663
    %943 = vmatprep.subr.mxu0 %v613
    %944 = vmatpush1.msra.mxu0 %v612
    %945 = vmatprep.subr.mxu0 %v562
    %946 = vmatpush1.msra.mxu0 %v561
    %947 = vmatprep.subr.mxu0 %v511
    %948 = vmatpush1.msra.mxu0 %v510
    %949 = vmatprep.subr.mxu0 %v460
    %950 = vmatpush1.msra.mxu0 %v459
    %951 = vmatprep.subr.mxu0 %v409
    %952 = vmatpush1.msra.mxu0 %v408
    %953 = vmatprep.subr.mxu0 %v358
    %954 = vmatpush1.msra.mxu0 %v357
    %955 = vmatprep.subr.mxu0 %v307
    %956 = vmatpush1.msra.mxu0 %v306
    %957 = vmatprep.subr.mxu0 0.0
    %958 = vmatpush2.msra.mxu0 0.0
    %959 = vmatprep.subr.mxu0 0.0
    %960 = vmatpush2.msra.mxu0 0.0
    %961 = vmatprep.subr.mxu0 0.0
    %962 = vmatpush2.msra.mxu0 0.0
    %963 = vmatprep.subr.mxu0 0.0
    %964 = vmatpush2.msra.mxu0 0.0
    %965 = vmatprep.subr.mxu0 0.0
    %966 = vmatpush2.msra.mxu0 0.0
    %967 = vmatprep.subr.mxu0 0.0
    %968 = vmatpush2.msra.mxu0 0.0
    %969 = vmatprep.subr.mxu0 0.0
    %970 = vmatpush2.msra.mxu0 0.0
    %971 = vmatprep.subr.mxu0 0.0
    %972 = vmatpush2.msra.mxu0 0.0
    %973 = vmatprep.subr.mxu0 0.0
    %974 = vmatpush2.msra.mxu0 0.0
    %975 = vmatprep.subr.mxu0 0.0
    %976 = vmatpush2.msra.mxu0 0.0
    %977 = vmatprep.subr.mxu0 0.0
    %978 = vmatpush2.msra.mxu0 0.0
    %979 = vmatprep.subr.mxu0 0.0
    %980 = vmatpush2.msra.mxu0 0.0
    %981 = vmatprep.subr.mxu0 0.0
    %982 = vmatpush2.msra.mxu0 0.0
    %983 = vmatprep.subr.mxu0 0.0
    %984 = vmatpush2.msra.mxu0 0.0
    %985 = vmatprep.subr.mxu0 0.0
    %986 = vmatpush2.msra.mxu0 0.0
    %987 = vmatprep.subr.mxu0 0.0
    %988 = vmatpush2.msra.mxu0 0.0
    %989 = vmatprep.mubr.f32.mxu0 0.0
    %990 = vmatmul.mubr.f32.gmra.mxu0 %v710
    %v991 = vpop.f32.mrf.mxu0
    %v992 = vadd.f32 0.0, %v991
    %v993 = vpop.f32.mrf.mxu0
    %v994 = vadd.f32 0.0, %v993
    %995 = vdwg.mxu0
    %996 = vmatprep.subr.mxu0 0.0
    %997 = vmatpush1.msra.mxu0 0.0
    %998 = vmatprep.subr.mxu0 0.0
    %999 = vmatpush1.msra.mxu0 0.0
    %1000 = vmatprep.subr.mxu0 0.0
    %1001 = vmatpush1.msra.mxu0 0.0
    %1002 = vmatprep.subr.mxu0 0.0
    %1003 = vmatpush1.msra.mxu0 0.0
    %1004 = vmatprep.subr.mxu0 0.0
    %1005 = vmatpush1.msra.mxu0 0.0
    %1006 = vmatprep.subr.mxu0 0.0
    %1007 = vmatpush1.msra.mxu0 0.0
    %1008 = vmatprep.subr.mxu0 0.0
    %1009 = vmatpush1.msra.mxu0 0.0
    %1010 = vmatprep.subr.mxu0 0.0
    %1011 = vmatpush1.msra.mxu0 0.0
    %1012 = vmatprep.subr.mxu0 %v666
    %1013 = vmatpush1.msra.mxu0 %v665
    %1014 = vmatprep.subr.mxu0 %v615
    %1015 = vmatpush1.msra.mxu0 %v614
    %1016 = vmatprep.subr.mxu0 %v564
    %1017 = vmatpush1.msra.mxu0 %v563
    %1018 = vmatprep.subr.mxu0 %v513
    %1019 = vmatpush1.msra.mxu0 %v512
    %1020 = vmatprep.subr.mxu0 %v462
    %1021 = vmatpush1.msra.mxu0 %v461
    %1022 = vmatprep.subr.mxu0 %v411
    %1023 = vmatpush1.msra.mxu0 %v410
    %1024 = vmatprep.subr.mxu0 %v360
    %1025 = vmatpush1.msra.mxu0 %v359
    %1026 = vmatprep.subr.mxu0 %v309
    %1027 = vmatpush1.msra.mxu0 %v308
    %1028 = vmatprep.subr.mxu0 0.0
    %1029 = vmatpush2.msra.mxu0 0.0
    %1030 = vmatprep.subr.mxu0 0.0
    %1031 = vmatpush2.msra.mxu0 0.0
    %1032 = vmatprep.subr.mxu0 0.0
    %1033 = vmatpush2.msra.mxu0 0.0
    %1034 = vmatprep.subr.mxu0 0.0
    %1035 = vmatpush2.msra.mxu0 0.0
    %1036 = vmatprep.subr.mxu0 0.0
    %1037 = vmatpush2.msra.mxu0 0.0
    %1038 = vmatprep.subr.mxu0 0.0
    %1039 = vmatpush2.msra.mxu0 0.0
    %1040 = vmatprep.subr.mxu0 0.0
    %1041 = vmatpush2.msra.mxu0 0.0
    %1042 = vmatprep.subr.mxu0 0.0
    %1043 = vmatpush2.msra.mxu0 0.0
    %1044 = vmatprep.subr.mxu0 0.0
    %1045 = vmatpush2.msra.mxu0 0.0
    %1046 = vmatprep.subr.mxu0 0.0
    %1047 = vmatpush2.msra.mxu0 0.0
    %1048 = vmatprep.subr.mxu0 0.0
    %1049 = vmatpush2.msra.mxu0 0.0
    %1050 = vmatprep.subr.mxu0 0.0
    %1051 = vmatpush2.msra.mxu0 0.0
    %1052 = vmatprep.subr.mxu0 0.0
    %1053 = vmatpush2.msra.mxu0 0.0
    %1054 = vmatprep.subr.mxu0 0.0
    %1055 = vmatpush2.msra.mxu0 0.0
    %1056 = vmatprep.subr.mxu0 0.0
    %1057 = vmatpush2.msra.mxu0 0.0
    %1058 = vmatprep.subr.mxu0 0.0
    %1059 = vmatpush2.msra.mxu0 0.0
    %1060 = vmatprep.mubr.f32.mxu0 0.0
    %1061 = vmatmul.mubr.f32.gmra.mxu0 %v710
    %v1062 = vpop.f32.mrf.mxu0
    %v1063 = vadd.f32 0.0, %v1062
    %v1064 = vpop.f32.mrf.mxu0
    %v1065 = vadd.f32 0.0, %v1064
    %1066 = vdwg.mxu0
    %1067 = vmatprep.subr.mxu0 0.0
    %1068 = vmatpush1.msra.mxu0 0.0
    %1069 = vmatprep.subr.mxu0 0.0
    %1070 = vmatpush1.msra.mxu0 0.0
    %1071 = vmatprep.subr.mxu0 0.0
    %1072 = vmatpush1.msra.mxu0 0.0
    %1073 = vmatprep.subr.mxu0 0.0
    %1074 = vmatpush1.msra.mxu0 0.0
    %1075 = vmatprep.subr.mxu0 0.0
    %1076 = vmatpush1.msra.mxu0 0.0
    %1077 = vmatprep.subr.mxu0 0.0
    %1078 = vmatpush1.msra.mxu0 0.0
    %1079 = vmatprep.subr.mxu0 0.0
    %1080 = vmatpush1.msra.mxu0 0.0
    %1081 = vmatprep.subr.mxu0 0.0
    %1082 = vmatpush1.msra.mxu0 0.0
    %1083 = vmatprep.subr.mxu0 %v668
    %1084 = vmatpush1.msra.mxu0 %v667
    %1085 = vmatprep.subr.mxu0 %v617
    %1086 = vmatpush1.msra.mxu0 %v616
    %1087 = vmatprep.subr.mxu0 %v566
    %1088 = vmatpush1.msra.mxu0 %v565
    %1089 = vmatprep.subr.mxu0 %v515
    %1090 = vmatpush1.msra.mxu0 %v514
    %1091 = vmatprep.subr.mxu0 %v464
    %1092 = vmatpush1.msra.mxu0 %v463
    %1093 = vmatprep.subr.mxu0 %v413
    %1094 = vmatpush1.msra.mxu0 %v412
    %1095 = vmatprep.subr.mxu0 %v362
    %1096 = vmatpush1.msra.mxu0 %v361
    %1097 = vmatprep.subr.mxu0 %v311
    %1098 = vmatpush1.msra.mxu0 %v310
    %1099 = vmatprep.subr.mxu0 0.0
    %1100 = vmatpush2.msra.mxu0 0.0
    %1101 = vmatprep.subr.mxu0 0.0
    %1102 = vmatpush2.msra.mxu0 0.0
    %1103 = vmatprep.subr.mxu0 0.0
    %1104 = vmatpush2.msra.mxu0 0.0
    %1105 = vmatprep.subr.mxu0 0.0
    %1106 = vmatpush2.msra.mxu0 0.0
    %1107 = vmatprep.subr.mxu0 0.0
    %1108 = vmatpush2.msra.mxu0 0.0
    %1109 = vmatprep.subr.mxu0 0.0
    %1110 = vmatpush2.msra.mxu0 0.0
    %1111 = vmatprep.subr.mxu0 0.0
    %1112 = vmatpush2.msra.mxu0 0.0
    %1113 = vmatprep.subr.mxu0 0.0
    %1114 = vmatpush2.msra.mxu0 0.0
    %1115 = vmatprep.subr.mxu0 0.0
    %1116 = vmatpush2.msra.mxu0 0.0
    %1117 = vmatprep.subr.mxu0 0.0
    %1118 = vmatpush2.msra.mxu0 0.0
    %1119 = vmatprep.subr.mxu0 0.0
    %1120 = vmatpush2.msra.mxu0 0.0
    %1121 = vmatprep.subr.mxu0 0.0
    %1122 = vmatpush2.msra.mxu0 0.0
    %1123 = vmatprep.subr.mxu0 0.0
    %1124 = vmatpush2.msra.mxu0 0.0
    %1125 = vmatprep.subr.mxu0 0.0
    %1126 = vmatpush2.msra.mxu0 0.0
    %1127 = vmatprep.subr.mxu0 0.0
    %1128 = vmatpush2.msra.mxu0 0.0
    %1129 = vmatprep.subr.mxu0 0.0
    %1130 = vmatpush2.msra.mxu0 0.0
    %1131 = vmatprep.mubr.f32.mxu0 0.0
    %1132 = vmatmul.mubr.f32.gmra.mxu0 %v710
    %v1133 = vpop.f32.mrf.mxu0
    %v1134 = vadd.f32 0.0, %v1133
    %v1135 = vpop.f32.mrf.mxu0
    %v1136 = vadd.f32 0.0, %v1135
    %1137 = vdwg.mxu0
    %1138 = vmatprep.subr.mxu0 0.0
    %1139 = vmatpush1.msra.mxu0 0.0
    %1140 = vmatprep.subr.mxu0 0.0
    %1141 = vmatpush1.msra.mxu0 0.0
    %1142 = vmatprep.subr.mxu0 0.0
    %1143 = vmatpush1.msra.mxu0 0.0
    %1144 = vmatprep.subr.mxu0 0.0
    %1145 = vmatpush1.msra.mxu0 0.0
    %1146 = vmatprep.subr.mxu0 0.0
    %1147 = vmatpush1.msra.mxu0 0.0
    %1148 = vmatprep.subr.mxu0 0.0
    %1149 = vmatpush1.msra.mxu0 0.0
    %1150 = vmatprep.subr.mxu0 0.0
    %1151 = vmatpush1.msra.mxu0 0.0
    %1152 = vmatprep.subr.mxu0 0.0
    %1153 = vmatpush1.msra.mxu0 0.0
    %1154 = vmatprep.subr.mxu0 %v670
    %1155 = vmatpush1.msra.mxu0 %v669
    %1156 = vmatprep.subr.mxu0 %v619
    %1157 = vmatpush1.msra.mxu0 %v618
    %1158 = vmatprep.subr.mxu0 %v568
    %1159 = vmatpush1.msra.mxu0 %v567
    %1160 = vmatprep.subr.mxu0 %v517
    %1161 = vmatpush1.msra.mxu0 %v516
    %1162 = vmatprep.subr.mxu0 %v466
    %1163 = vmatpush1.msra.mxu0 %v465
    %1164 = vmatprep.subr.mxu0 %v415
    %1165 = vmatpush1.msra.mxu0 %v414
    %1166 = vmatprep.subr.mxu0 %v364
    %1167 = vmatpush1.msra.mxu0 %v363
    %1168 = vmatprep.subr.mxu0 %v313
    %1169 = vmatpush1.msra.mxu0 %v312
    %1170 = vmatprep.subr.mxu0 0.0
    %1171 = vmatpush2.msra.mxu0 0.0
    %1172 = vmatprep.subr.mxu0 0.0
    %1173 = vmatpush2.msra.mxu0 0.0
    %1174 = vmatprep.subr.mxu0 0.0
    %1175 = vmatpush2.msra.mxu0 0.0
    %1176 = vmatprep.subr.mxu0 0.0
    %1177 = vmatpush2.msra.mxu0 0.0
    %1178 = vmatprep.subr.mxu0 0.0
    %1179 = vmatpush2.msra.mxu0 0.0
    %1180 = vmatprep.subr.mxu0 0.0
    %1181 = vmatpush2.msra.mxu0 0.0
    %1182 = vmatprep.subr.mxu0 0.0
    %1183 = vmatpush2.msra.mxu0 0.0
    %1184 = vmatprep.subr.mxu0 0.0
    %1185 = vmatpush2.msra.mxu0 0.0
    %1186 = vmatprep.subr.mxu0 0.0
    %1187 = vmatpush2.msra.mxu0 0.0
    %1188 = vmatprep.subr.mxu0 0.0
    %1189 = vmatpush2.msra.mxu0 0.0
    %1190 = vmatprep.subr.mxu0 0.0
    %1191 = vmatpush2.msra.mxu0 0.0
    %1192 = vmatprep.subr.mxu0 0.0
    %1193 = vmatpush2.msra.mxu0 0.0
    %1194 = vmatprep.subr.mxu0 0.0
    %1195 = vmatpush2.msra.mxu0 0.0
    %1196 = vmatprep.subr.mxu0 0.0
    %1197 = vmatpush2.msra.mxu0 0.0
    %1198 = vmatprep.subr.mxu0 0.0
    %1199 = vmatpush2.msra.mxu0 0.0
    %1200 = vmatprep.subr.mxu0 0.0
    %1201 = vmatpush2.msra.mxu0 0.0
    %1202 = vmatprep.mubr.f32.mxu0 0.0
    %1203 = vmatmul.mubr.f32.gmra.mxu0 %v710
    %v1204 = vpop.f32.mrf.mxu0
    %v1205 = vadd.f32 0.0, %v1204
    %v1206 = vpop.f32.mrf.mxu0
    %v1207 = vadd.f32 0.0, %v1206
    %1208 = vdwg.mxu0
    %1209 = vmatprep.subr.mxu0 0.0
    %1210 = vmatpush1.msra.mxu0 0.0
    %1211 = vmatprep.subr.mxu0 0.0
    %1212 = vmatpush1.msra.mxu0 0.0
    %1213 = vmatprep.subr.mxu0 0.0
    %1214 = vmatpush1.msra.mxu0 0.0
    %1215 = vmatprep.subr.mxu0 0.0
    %1216 = vmatpush1.msra.mxu0 0.0
    %1217 = vmatprep.subr.mxu0 0.0
    %1218 = vmatpush1.msra.mxu0 0.0
    %1219 = vmatprep.subr.mxu0 0.0
    %1220 = vmatpush1.msra.mxu0 0.0
    %1221 = vmatprep.subr.mxu0 0.0
    %1222 = vmatpush1.msra.mxu0 0.0
    %1223 = vmatprep.subr.mxu0 0.0
    %1224 = vmatpush1.msra.mxu0 0.0
    %1225 = vmatprep.subr.mxu0 %v672
    %1226 = vmatpush1.msra.mxu0 %v671
    %1227 = vmatprep.subr.mxu0 %v621
    %1228 = vmatpush1.msra.mxu0 %v620
    %1229 = vmatprep.subr.mxu0 %v570
    %1230 = vmatpush1.msra.mxu0 %v569
    %1231 = vmatprep.subr.mxu0 %v519
    %1232 = vmatpush1.msra.mxu0 %v518
    %1233 = vmatprep.subr.mxu0 %v468
    %1234 = vmatpush1.msra.mxu0 %v467
    %1235 = vmatprep.subr.mxu0 %v417
    %1236 = vmatpush1.msra.mxu0 %v416
    %1237 = vmatprep.subr.mxu0 %v366
    %1238 = vmatpush1.msra.mxu0 %v365
    %1239 = vmatprep.subr.mxu0 %v315
    %1240 = vmatpush1.msra.mxu0 %v314
    %1241 = vmatprep.subr.mxu0 0.0
    %1242 = vmatpush2.msra.mxu0 0.0
    %1243 = vmatprep.subr.mxu0 0.0
    %1244 = vmatpush2.msra.mxu0 0.0
    %1245 = vmatprep.subr.mxu0 0.0
    %1246 = vmatpush2.msra.mxu0 0.0
    %1247 = vmatprep.subr.mxu0 0.0
    %1248 = vmatpush2.msra.mxu0 0.0
    %1249 = vmatprep.subr.mxu0 0.0
    %1250 = vmatpush2.msra.mxu0 0.0
    %1251 = vmatprep.subr.mxu0 0.0
    %1252 = vmatpush2.msra.mxu0 0.0
    %1253 = vmatprep.subr.mxu0 0.0
    %1254 = vmatpush2.msra.mxu0 0.0
    %1255 = vmatprep.subr.mxu0 0.0
    %1256 = vmatpush2.msra.mxu0 0.0
    %1257 = vmatprep.subr.mxu0 0.0
    %1258 = vmatpush2.msra.mxu0 0.0
    %1259 = vmatprep.subr.mxu0 0.0
    %1260 = vmatpush2.msra.mxu0 0.0
    %1261 = vmatprep.subr.mxu0 0.0
    %1262 = vmatpush2.msra.mxu0 0.0
    %1263 = vmatprep.subr.mxu0 0.0
    %1264 = vmatpush2.msra.mxu0 0.0
    %1265 = vmatprep.subr.mxu0 0.0
    %1266 = vmatpush2.msra.mxu0 0.0
    %1267 = vmatprep.subr.mxu0 0.0
    %1268 = vmatpush2.msra.mxu0 0.0
    %1269 = vmatprep.subr.mxu0 0.0
    %1270 = vmatpush2.msra.mxu0 0.0
    %1271 = vmatprep.subr.mxu0 0.0
    %1272 = vmatpush2.msra.mxu0 0.0
    %1273 = vmatprep.mubr.f32.mxu0 0.0
    %1274 = vmatmul.mubr.f32.gmra.mxu0 %v710
    %v1275 = vpop.f32.mrf.mxu0
    %v1276 = vadd.f32 0.0, %v1275
    %v1277 = vpop.f32.mrf.mxu0
    %v1278 = vadd.f32 0.0, %v1277
    %1279 = vdwg.mxu0
    %1280 = vmatprep.subr.mxu0 0.0
    %1281 = vmatpush1.msra.mxu0 0.0
    %1282 = vmatprep.subr.mxu0 0.0
    %1283 = vmatpush1.msra.mxu0 0.0
    %1284 = vmatprep.subr.mxu0 0.0
    %1285 = vmatpush1.msra.mxu0 0.0
    %1286 = vmatprep.subr.mxu0 0.0
    %1287 = vmatpush1.msra.mxu0 0.0
    %1288 = vmatprep.subr.mxu0 0.0
    %1289 = vmatpush1.msra.mxu0 0.0
    %1290 = vmatprep.subr.mxu0 0.0
    %1291 = vmatpush1.msra.mxu0 0.0
    %1292 = vmatprep.subr.mxu0 0.0
    %1293 = vmatpush1.msra.mxu0 0.0
    %1294 = vmatprep.subr.mxu0 0.0
    %1295 = vmatpush1.msra.mxu0 0.0
    %1296 = vmatprep.subr.mxu0 %v674
    %1297 = vmatpush1.msra.mxu0 %v673
    %1298 = vmatprep.subr.mxu0 %v623
    %1299 = vmatpush1.msra.mxu0 %v622
    %1300 = vmatprep.subr.mxu0 %v572
    %1301 = vmatpush1.msra.mxu0 %v571
    %1302 = vmatprep.subr.mxu0 %v521
    %1303 = vmatpush1.msra.mxu0 %v520
    %1304 = vmatprep.subr.mxu0 %v470
    %1305 = vmatpush1.msra.mxu0 %v469
    %1306 = vmatprep.subr.mxu0 %v419
    %1307 = vmatpush1.msra.mxu0 %v418
    %1308 = vmatprep.subr.mxu0 %v368
    %1309 = vmatpush1.msra.mxu0 %v367
    %1310 = vmatprep.subr.mxu0 %v317
    %1311 = vmatpush1.msra.mxu0 %v316
    %1312 = vmatprep.subr.mxu0 0.0
    %1313 = vmatpush2.msra.mxu0 0.0
    %1314 = vmatprep.subr.mxu0 0.0
    %1315 = vmatpush2.msra.mxu0 0.0
    %1316 = vmatprep.subr.mxu0 0.0
    %1317 = vmatpush2.msra.mxu0 0.0
    %1318 = vmatprep.subr.mxu0 0.0
    %1319 = vmatpush2.msra.mxu0 0.0
    %1320 = vmatprep.subr.mxu0 0.0
    %1321 = vmatpush2.msra.mxu0 0.0
    %1322 = vmatprep.subr.mxu0 0.0
    %1323 = vmatpush2.msra.mxu0 0.0
    %1324 = vmatprep.subr.mxu0 0.0
    %1325 = vmatpush2.msra.mxu0 0.0
    %1326 = vmatprep.subr.mxu0 0.0
    %1327 = vmatpush2.msra.mxu0 0.0
    %1328 = vmatprep.subr.mxu0 0.0
    %1329 = vmatpush2.msra.mxu0 0.0
    %1330 = vmatprep.subr.mxu0 0.0
    %1331 = vmatpush2.msra.mxu0 0.0
    %1332 = vmatprep.subr.mxu0 0.0
    %1333 = vmatpush2.msra.mxu0 0.0
    %1334 = vmatprep.subr.mxu0 0.0
    %1335 = vmatpush2.msra.mxu0 0.0
    %1336 = vmatprep.subr.mxu0 0.0
    %1337 = vmatpush2.msra.mxu0 0.0
    %1338 = vmatprep.subr.mxu0 0.0
    %1339 = vmatpush2.msra.mxu0 0.0
    %1340 = vmatprep.subr.mxu0 0.0
    %1341 = vmatpush2.msra.mxu0 0.0
    %1342 = vmatprep.subr.mxu0 0.0
    %1343 = vmatpush2.msra.mxu0 0.0
    %1344 = vmatprep.mubr.f32.mxu0 0.0
    %1345 = vmatmul.mubr.f32.gmra.mxu0 %v710
    %v1346 = vpop.f32.mrf.mxu0
    %v1347 = vadd.f32 0.0, %v1346
    %v1348 = vpop.f32.mrf.mxu0
    %v1349 = vadd.f32 0.0, %v1348
    %1350 = vdwg.mxu0
    %1351 = vmatprep.subr.mxu0 0.0
    %1352 = vmatpush1.msra.mxu0 0.0
    %1353 = vmatprep.subr.mxu0 0.0
    %1354 = vmatpush1.msra.mxu0 0.0
    %1355 = vmatprep.subr.mxu0 0.0
    %1356 = vmatpush1.msra.mxu0 0.0
    %1357 = vmatprep.subr.mxu0 0.0
    %1358 = vmatpush1.msra.mxu0 0.0
    %1359 = vmatprep.subr.mxu0 0.0
    %1360 = vmatpush1.msra.mxu0 0.0
    %1361 = vmatprep.subr.mxu0 0.0
    %1362 = vmatpush1.msra.mxu0 0.0
    %1363 = vmatprep.subr.mxu0 0.0
    %1364 = vmatpush1.msra.mxu0 0.0
    %1365 = vmatprep.subr.mxu0 0.0
    %1366 = vmatpush1.msra.mxu0 0.0
    %1367 = vmatprep.subr.mxu0 %v676
    %1368 = vmatpush1.msra.mxu0 %v675
    %1369 = vmatprep.subr.mxu0 %v625
    %1370 = vmatpush1.msra.mxu0 %v624
    %1371 = vmatprep.subr.mxu0 %v574
    %1372 = vmatpush1.msra.mxu0 %v573
    %1373 = vmatprep.subr.mxu0 %v523
    %1374 = vmatpush1.msra.mxu0 %v522
    %1375 = vmatprep.subr.mxu0 %v472
    %1376 = vmatpush1.msra.mxu0 %v471
    %1377 = vmatprep.subr.mxu0 %v421
    %1378 = vmatpush1.msra.mxu0 %v420
    %1379 = vmatprep.subr.mxu0 %v370
    %1380 = vmatpush1.msra.mxu0 %v369
    %1381 = vmatprep.subr.mxu0 %v319
    %1382 = vmatpush1.msra.mxu0 %v318
    %1383 = vmatprep.subr.mxu0 0.0
    %1384 = vmatpush2.msra.mxu0 0.0
    %1385 = vmatprep.subr.mxu0 0.0
    %1386 = vmatpush2.msra.mxu0 0.0
    %1387 = vmatprep.subr.mxu0 0.0
    %1388 = vmatpush2.msra.mxu0 0.0
    %1389 = vmatprep.subr.mxu0 0.0
    %1390 = vmatpush2.msra.mxu0 0.0
    %1391 = vmatprep.subr.mxu0 0.0
    %1392 = vmatpush2.msra.mxu0 0.0
    %1393 = vmatprep.subr.mxu0 0.0
    %1394 = vmatpush2.msra.mxu0 0.0
    %1395 = vmatprep.subr.mxu0 0.0
    %1396 = vmatpush2.msra.mxu0 0.0
    %1397 = vmatprep.subr.mxu0 0.0
    %1398 = vmatpush2.msra.mxu0 0.0
    %1399 = vmatprep.subr.mxu0 0.0
    %1400 = vmatpush2.msra.mxu0 0.0
    %1401 = vmatprep.subr.mxu0 0.0
    %1402 = vmatpush2.msra.mxu0 0.0
    %1403 = vmatprep.subr.mxu0 0.0
    %1404 = vmatpush2.msra.mxu0 0.0
    %1405 = vmatprep.subr.mxu0 0.0
    %1406 = vmatpush2.msra.mxu0 0.0
    %1407 = vmatprep.subr.mxu0 0.0
    %1408 = vmatpush2.msra.mxu0 0.0
    %1409 = vmatprep.subr.mxu0 0.0
    %1410 = vmatpush2.msra.mxu0 0.0
    %1411 = vmatprep.subr.mxu0 0.0
    %1412 = vmatpush2.msra.mxu0 0.0
    %1413 = vmatprep.subr.mxu0 0.0
    %1414 = vmatpush2.msra.mxu0 0.0
    %1415 = vmatprep.mubr.f32.mxu0 0.0
    %1416 = vmatmul.mubr.f32.gmra.mxu0 %v710
    %v1417 = vpop.f32.mrf.mxu0
    %v1418 = vadd.f32 0.0, %v1417
    %v1419 = vpop.f32.mrf.mxu0
    %v1420 = vadd.f32 0.0, %v1419
    %1421 = vdwg.mxu0
    %1422 = vmatprep.subr.mxu0 0.0
    %1423 = vmatpush1.msra.mxu0 0.0
    %1424 = vmatprep.subr.mxu0 0.0
    %1425 = vmatpush1.msra.mxu0 0.0
    %1426 = vmatprep.subr.mxu0 0.0
    %1427 = vmatpush1.msra.mxu0 0.0
    %1428 = vmatprep.subr.mxu0 0.0
    %1429 = vmatpush1.msra.mxu0 0.0
    %1430 = vmatprep.subr.mxu0 0.0
    %1431 = vmatpush1.msra.mxu0 0.0
    %1432 = vmatprep.subr.mxu0 0.0
    %1433 = vmatpush1.msra.mxu0 0.0
    %1434 = vmatprep.subr.mxu0 0.0
    %1435 = vmatpush1.msra.mxu0 0.0
    %1436 = vmatprep.subr.mxu0 0.0
    %1437 = vmatpush1.msra.mxu0 0.0
    %1438 = vmatprep.subr.mxu0 %v678
    %1439 = vmatpush1.msra.mxu0 %v677
    %1440 = vmatprep.subr.mxu0 %v627
    %1441 = vmatpush1.msra.mxu0 %v626
    %1442 = vmatprep.subr.mxu0 %v576
    %1443 = vmatpush1.msra.mxu0 %v575
    %1444 = vmatprep.subr.mxu0 %v525
    %1445 = vmatpush1.msra.mxu0 %v524
    %1446 = vmatprep.subr.mxu0 %v474
    %1447 = vmatpush1.msra.mxu0 %v473
    %1448 = vmatprep.subr.mxu0 %v423
    %1449 = vmatpush1.msra.mxu0 %v422
    %1450 = vmatprep.subr.mxu0 %v372
    %1451 = vmatpush1.msra.mxu0 %v371
    %1452 = vmatprep.subr.mxu0 %v321
    %1453 = vmatpush1.msra.mxu0 %v320
    %1454 = vmatprep.subr.mxu0 0.0
    %1455 = vmatpush2.msra.mxu0 0.0
    %1456 = vmatprep.subr.mxu0 0.0
    %1457 = vmatpush2.msra.mxu0 0.0
    %1458 = vmatprep.subr.mxu0 0.0
    %1459 = vmatpush2.msra.mxu0 0.0
    %1460 = vmatprep.subr.mxu0 0.0
    %1461 = vmatpush2.msra.mxu0 0.0
    %1462 = vmatprep.subr.mxu0 0.0
    %1463 = vmatpush2.msra.mxu0 0.0
    %1464 = vmatprep.subr.mxu0 0.0
    %1465 = vmatpush2.msra.mxu0 0.0
    %1466 = vmatprep.subr.mxu0 0.0
    %1467 = vmatpush2.msra.mxu0 0.0
    %1468 = vmatprep.subr.mxu0 0.0
    %1469 = vmatpush2.msra.mxu0 0.0
    %1470 = vmatprep.subr.mxu0 0.0
    %1471 = vmatpush2.msra.mxu0 0.0
    %1472 = vmatprep.subr.mxu0 0.0
    %1473 = vmatpush2.msra.mxu0 0.0
    %1474 = vmatprep.subr.mxu0 0.0
    %1475 = vmatpush2.msra.mxu0 0.0
    %1476 = vmatprep.subr.mxu0 0.0
    %1477 = vmatpush2.msra.mxu0 0.0
    %1478 = vmatprep.subr.mxu0 0.0
    %1479 = vmatpush2.msra.mxu0 0.0
    %1480 = vmatprep.subr.mxu0 0.0
    %1481 = vmatpush2.msra.mxu0 0.0
    %1482 = vmatprep.subr.mxu0 0.0
    %1483 = vmatpush2.msra.mxu0 0.0
    %1484 = vmatprep.subr.mxu0 0.0
    %1485 = vmatpush2.msra.mxu0 0.0
    %1486 = vmatprep.mubr.f32.mxu0 0.0
    %1487 = vmatmul.mubr.f32.gmra.mxu0 %v710
    %v1488 = vpop.f32.mrf.mxu0
    %v1489 = vadd.f32 0.0, %v1488
    %v1490 = vpop.f32.mrf.mxu0
    %v1491 = vadd.f32 0.0, %v1490
    %1492 = vdwg.mxu0
    %1493 = vmatprep.subr.mxu0 0.0
    %1494 = vmatpush1.msra.mxu0 0.0
    %1495 = vmatprep.subr.mxu0 0.0
    %1496 = vmatpush1.msra.mxu0 0.0
    %1497 = vmatprep.subr.mxu0 0.0
    %1498 = vmatpush1.msra.mxu0 0.0
    %1499 = vmatprep.subr.mxu0 0.0
    %1500 = vmatpush1.msra.mxu0 0.0
    %1501 = vmatprep.subr.mxu0 0.0
    %1502 = vmatpush1.msra.mxu0 0.0
    %1503 = vmatprep.subr.mxu0 0.0
    %1504 = vmatpush1.msra.mxu0 0.0
    %1505 = vmatprep.subr.mxu0 0.0
    %1506 = vmatpush1.msra.mxu0 0.0
    %1507 = vmatprep.subr.mxu0 0.0
    %1508 = vmatpush1.msra.mxu0 0.0
    %1509 = vmatprep.subr.mxu0 %v680
    %1510 = vmatpush1.msra.mxu0 %v679
    %1511 = vmatprep.subr.mxu0 %v629
    %1512 = vmatpush1.msra.mxu0 %v628
    %1513 = vmatprep.subr.mxu0 %v578
    %1514 = vmatpush1.msra.mxu0 %v577
    %1515 = vmatprep.subr.mxu0 %v527
    %1516 = vmatpush1.msra.mxu0 %v526
    %1517 = vmatprep.subr.mxu0 %v476
    %1518 = vmatpush1.msra.mxu0 %v475
    %1519 = vmatprep.subr.mxu0 %v425
    %1520 = vmatpush1.msra.mxu0 %v424
    %1521 = vmatprep.subr.mxu0 %v374
    %1522 = vmatpush1.msra.mxu0 %v373
    %1523 = vmatprep.subr.mxu0 %v323
    %1524 = vmatpush1.msra.mxu0 %v322
    %1525 = vmatprep.subr.mxu0 0.0
    %1526 = vmatpush2.msra.mxu0 0.0
    %1527 = vmatprep.subr.mxu0 0.0
    %1528 = vmatpush2.msra.mxu0 0.0
    %1529 = vmatprep.subr.mxu0 0.0
    %1530 = vmatpush2.msra.mxu0 0.0
    %1531 = vmatprep.subr.mxu0 0.0
    %1532 = vmatpush2.msra.mxu0 0.0
    %1533 = vmatprep.subr.mxu0 0.0
    %1534 = vmatpush2.msra.mxu0 0.0
    %1535 = vmatprep.subr.mxu0 0.0
    %1536 = vmatpush2.msra.mxu0 0.0
    %1537 = vmatprep.subr.mxu0 0.0
    %1538 = vmatpush2.msra.mxu0 0.0
    %1539 = vmatprep.subr.mxu0 0.0
    %1540 = vmatpush2.msra.mxu0 0.0
    %1541 = vmatprep.subr.mxu0 0.0
    %1542 = vmatpush2.msra.mxu0 0.0
    %1543 = vmatprep.subr.mxu0 0.0
    %1544 = vmatpush2.msra.mxu0 0.0
    %1545 = vmatprep.subr.mxu0 0.0
    %1546 = vmatpush2.msra.mxu0 0.0
    %1547 = vmatprep.subr.mxu0 0.0
    %1548 = vmatpush2.msra.mxu0 0.0
    %1549 = vmatprep.subr.mxu0 0.0
    %1550 = vmatpush2.msra.mxu0 0.0
    %1551 = vmatprep.subr.mxu0 0.0
    %1552 = vmatpush2.msra.mxu0 0.0
    %1553 = vmatprep.subr.mxu0 0.0
    %1554 = vmatpush2.msra.mxu0 0.0
    %1555 = vmatprep.subr.mxu0 0.0
    %1556 = vmatpush2.msra.mxu0 0.0
    %1557 = vmatprep.mubr.f32.mxu0 0.0
    %1558 = vmatmul.mubr.f32.gmra.mxu0 %v710
    %v1559 = vpop.f32.mrf.mxu0
    %v1560 = vadd.f32 0.0, %v1559
    %v1561 = vpop.f32.mrf.mxu0
    %v1562 = vadd.f32 0.0, %v1561
    %1563 = vdwg.mxu0
    %1564 = vmatprep.subr.mxu0 0.0
    %1565 = vmatpush1.msra.mxu0 0.0
    %1566 = vmatprep.subr.mxu0 0.0
    %1567 = vmatpush1.msra.mxu0 0.0
    %1568 = vmatprep.subr.mxu0 0.0
    %1569 = vmatpush1.msra.mxu0 0.0
    %1570 = vmatprep.subr.mxu0 0.0
    %1571 = vmatpush1.msra.mxu0 0.0
    %1572 = vmatprep.subr.mxu0 0.0
    %1573 = vmatpush1.msra.mxu0 0.0
    %1574 = vmatprep.subr.mxu0 0.0
    %1575 = vmatpush1.msra.mxu0 0.0
    %1576 = vmatprep.subr.mxu0 0.0
    %1577 = vmatpush1.msra.mxu0 0.0
    %1578 = vmatprep.subr.mxu0 0.0
    %1579 = vmatpush1.msra.mxu0 0.0
    %1580 = vmatprep.subr.mxu0 %v682
    %1581 = vmatpush1.msra.mxu0 %v681
    %1582 = vmatprep.subr.mxu0 %v631
    %1583 = vmatpush1.msra.mxu0 %v630
    %1584 = vmatprep.subr.mxu0 %v580
    %1585 = vmatpush1.msra.mxu0 %v579
    %1586 = vmatprep.subr.mxu0 %v529
    %1587 = vmatpush1.msra.mxu0 %v528
    %1588 = vmatprep.subr.mxu0 %v478
    %1589 = vmatpush1.msra.mxu0 %v477
    %1590 = vmatprep.subr.mxu0 %v427
    %1591 = vmatpush1.msra.mxu0 %v426
    %1592 = vmatprep.subr.mxu0 %v376
    %1593 = vmatpush1.msra.mxu0 %v375
    %1594 = vmatprep.subr.mxu0 %v325
    %1595 = vmatpush1.msra.mxu0 %v324
    %1596 = vmatprep.subr.mxu0 0.0
    %1597 = vmatpush2.msra.mxu0 0.0
    %1598 = vmatprep.subr.mxu0 0.0
    %1599 = vmatpush2.msra.mxu0 0.0
    %1600 = vmatprep.subr.mxu0 0.0
    %1601 = vmatpush2.msra.mxu0 0.0
    %1602 = vmatprep.subr.mxu0 0.0
    %1603 = vmatpush2.msra.mxu0 0.0
    %1604 = vmatprep.subr.mxu0 0.0
    %1605 = vmatpush2.msra.mxu0 0.0
    %1606 = vmatprep.subr.mxu0 0.0
    %1607 = vmatpush2.msra.mxu0 0.0
    %1608 = vmatprep.subr.mxu0 0.0
    %1609 = vmatpush2.msra.mxu0 0.0
    %1610 = vmatprep.subr.mxu0 0.0
    %1611 = vmatpush2.msra.mxu0 0.0
    %1612 = vmatprep.subr.mxu0 0.0
    %1613 = vmatpush2.msra.mxu0 0.0
    %1614 = vmatprep.subr.mxu0 0.0
    %1615 = vmatpush2.msra.mxu0 0.0
    %1616 = vmatprep.subr.mxu0 0.0
    %1617 = vmatpush2.msra.mxu0 0.0
    %1618 = vmatprep.subr.mxu0 0.0
    %1619 = vmatpush2.msra.mxu0 0.0
    %1620 = vmatprep.subr.mxu0 0.0
    %1621 = vmatpush2.msra.mxu0 0.0
    %1622 = vmatprep.subr.mxu0 0.0
    %1623 = vmatpush2.msra.mxu0 0.0
    %1624 = vmatprep.subr.mxu0 0.0
    %1625 = vmatpush2.msra.mxu0 0.0
    %1626 = vmatprep.subr.mxu0 0.0
    %1627 = vmatpush2.msra.mxu0 0.0
    %1628 = vmatprep.mubr.f32.mxu0 0.0
    %1629 = vmatmul.mubr.f32.gmra.mxu0 %v710
    %v1630 = vpop.f32.mrf.mxu0
    %v1631 = vadd.f32 0.0, %v1630
    %v1632 = vpop.f32.mrf.mxu0
    %v1633 = vadd.f32 0.0, %v1632
    %1634 = vdwg.mxu0
    %1635 = vmatprep.subr.mxu0 0.0
    %1636 = vmatpush1.msra.mxu0 0.0
    %1637 = vmatprep.subr.mxu0 0.0
    %1638 = vmatpush1.msra.mxu0 0.0
    %1639 = vmatprep.subr.mxu0 0.0
    %1640 = vmatpush1.msra.mxu0 0.0
    %1641 = vmatprep.subr.mxu0 0.0
    %1642 = vmatpush1.msra.mxu0 0.0
    %1643 = vmatprep.subr.mxu0 0.0
    %1644 = vmatpush1.msra.mxu0 0.0
    %1645 = vmatprep.subr.mxu0 0.0
    %1646 = vmatpush1.msra.mxu0 0.0
    %1647 = vmatprep.subr.mxu0 0.0
    %1648 = vmatpush1.msra.mxu0 0.0
    %1649 = vmatprep.subr.mxu0 0.0
    %1650 = vmatpush1.msra.mxu0 0.0
    %1651 = vmatprep.subr.mxu0 %v684
    %1652 = vmatpush1.msra.mxu0 %v683
    %1653 = vmatprep.subr.mxu0 %v633
    %1654 = vmatpush1.msra.mxu0 %v632
    %1655 = vmatprep.subr.mxu0 %v582
    %1656 = vmatpush1.msra.mxu0 %v581
    %1657 = vmatprep.subr.mxu0 %v531
    %1658 = vmatpush1.msra.mxu0 %v530
    %1659 = vmatprep.subr.mxu0 %v480
    %1660 = vmatpush1.msra.mxu0 %v479
    %1661 = vmatprep.subr.mxu0 %v429
    %1662 = vmatpush1.msra.mxu0 %v428
    %1663 = vmatprep.subr.mxu0 %v378
    %1664 = vmatpush1.msra.mxu0 %v377
    %1665 = vmatprep.subr.mxu0 %v327
    %1666 = vmatpush1.msra.mxu0 %v326
    %1667 = vmatprep.subr.mxu0 0.0
    %1668 = vmatpush2.msra.mxu0 0.0
    %1669 = vmatprep.subr.mxu0 0.0
    %1670 = vmatpush2.msra.mxu0 0.0
    %1671 = vmatprep.subr.mxu0 0.0
    %1672 = vmatpush2.msra.mxu0 0.0
    %1673 = vmatprep.subr.mxu0 0.0
    %1674 = vmatpush2.msra.mxu0 0.0
    %1675 = vmatprep.subr.mxu0 0.0
    %1676 = vmatpush2.msra.mxu0 0.0
    %1677 = vmatprep.subr.mxu0 0.0
    %1678 = vmatpush2.msra.mxu0 0.0
    %1679 = vmatprep.subr.mxu0 0.0
    %1680 = vmatpush2.msra.mxu0 0.0
    %1681 = vmatprep.subr.mxu0 0.0
    %1682 = vmatpush2.msra.mxu0 0.0
    %1683 = vmatprep.subr.mxu0 0.0
    %1684 = vmatpush2.msra.mxu0 0.0
    %1685 = vmatprep.subr.mxu0 0.0
    %1686 = vmatpush2.msra.mxu0 0.0
    %1687 = vmatprep.subr.mxu0 0.0
    %1688 = vmatpush2.msra.mxu0 0.0
    %1689 = vmatprep.subr.mxu0 0.0
    %1690 = vmatpush2.msra.mxu0 0.0
    %1691 = vmatprep.subr.mxu0 0.0
    %1692 = vmatpush2.msra.mxu0 0.0
    %1693 = vmatprep.subr.mxu0 0.0
    %1694 = vmatpush2.msra.mxu0 0.0
    %1695 = vmatprep.subr.mxu0 0.0
    %1696 = vmatpush2.msra.mxu0 0.0
    %1697 = vmatprep.subr.mxu0 0.0
    %1698 = vmatpush2.msra.mxu0 0.0
    %1699 = vmatprep.mubr.f32.mxu0 0.0
    %1700 = vmatmul.mubr.f32.gmra.mxu0 %v710
    %v1701 = vpop.f32.mrf.mxu0
    %v1702 = vadd.f32 0.0, %v1701
    %v1703 = vpop.f32.mrf.mxu0
    %v1704 = vadd.f32 0.0, %v1703
    %1705 = vdwg.mxu0
    %1706 = vmatprep.subr.mxu0 0.0
    %1707 = vmatpush1.msra.mxu0 0.0
    %1708 = vmatprep.subr.mxu0 0.0
    %1709 = vmatpush1.msra.mxu0 0.0
    %1710 = vmatprep.subr.mxu0 0.0
    %1711 = vmatpush1.msra.mxu0 0.0
    %1712 = vmatprep.subr.mxu0 0.0
    %1713 = vmatpush1.msra.mxu0 0.0
    %1714 = vmatprep.subr.mxu0 0.0
    %1715 = vmatpush1.msra.mxu0 0.0
    %1716 = vmatprep.subr.mxu0 0.0
    %1717 = vmatpush1.msra.mxu0 0.0
    %1718 = vmatprep.subr.mxu0 0.0
    %1719 = vmatpush1.msra.mxu0 0.0
    %1720 = vmatprep.subr.mxu0 0.0
    %1721 = vmatpush1.msra.mxu0 0.0
    %1722 = vmatprep.subr.mxu0 %v686
    %1723 = vmatpush1.msra.mxu0 %v685
    %1724 = vmatprep.subr.mxu0 %v635
    %1725 = vmatpush1.msra.mxu0 %v634
    %1726 = vmatprep.subr.mxu0 %v584
    %1727 = vmatpush1.msra.mxu0 %v583
    %1728 = vmatprep.subr.mxu0 %v533
    %1729 = vmatpush1.msra.mxu0 %v532
    %1730 = vmatprep.subr.mxu0 %v482
    %1731 = vmatpush1.msra.mxu0 %v481
    %1732 = vmatprep.subr.mxu0 %v431
    %1733 = vmatpush1.msra.mxu0 %v430
    %1734 = vmatprep.subr.mxu0 %v380
    %1735 = vmatpush1.msra.mxu0 %v379
    %1736 = vmatprep.subr.mxu0 %v329
    %1737 = vmatpush1.msra.mxu0 %v328
    %1738 = vmatprep.subr.mxu0 0.0
    %1739 = vmatpush2.msra.mxu0 0.0
    %1740 = vmatprep.subr.mxu0 0.0
    %1741 = vmatpush2.msra.mxu0 0.0
    %1742 = vmatprep.subr.mxu0 0.0
    %1743 = vmatpush2.msra.mxu0 0.0
    %1744 = vmatprep.subr.mxu0 0.0
    %1745 = vmatpush2.msra.mxu0 0.0
    %1746 = vmatprep.subr.mxu0 0.0
    %1747 = vmatpush2.msra.mxu0 0.0
    %1748 = vmatprep.subr.mxu0 0.0
    %1749 = vmatpush2.msra.mxu0 0.0
    %1750 = vmatprep.subr.mxu0 0.0
    %1751 = vmatpush2.msra.mxu0 0.0
    %1752 = vmatprep.subr.mxu0 0.0
    %1753 = vmatpush2.msra.mxu0 0.0
    %1754 = vmatprep.subr.mxu0 0.0
    %1755 = vmatpush2.msra.mxu0 0.0
    %1756 = vmatprep.subr.mxu0 0.0
    %1757 = vmatpush2.msra.mxu0 0.0
    %1758 = vmatprep.subr.mxu0 0.0
    %1759 = vmatpush2.msra.mxu0 0.0
    %1760 = vmatprep.subr.mxu0 0.0
    %1761 = vmatpush2.msra.mxu0 0.0
    %1762 = vmatprep.subr.mxu0 0.0
    %1763 = vmatpush2.msra.mxu0 0.0
    %1764 = vmatprep.subr.mxu0 0.0
    %1765 = vmatpush2.msra.mxu0 0.0
    %1766 = vmatprep.subr.mxu0 0.0
    %1767 = vmatpush2.msra.mxu0 0.0
    %1768 = vmatprep.subr.mxu0 0.0
    %1769 = vmatpush2.msra.mxu0 0.0
    %1770 = vmatprep.mubr.f32.mxu0 0.0
    %1771 = vmatmul.mubr.f32.gmra.mxu0 %v710
    %v1772 = vpop.f32.mrf.mxu0
    %v1773 = vadd.f32 0.0, %v1772
    %v1774 = vpop.f32.mrf.mxu0
    %v1775 = vadd.f32 0.0, %v1774
    %1776 = vdwg.mxu0
    %1777 = vmatprep.subr.mxu0 0.0
    %1778 = vmatpush1.msra.mxu0 0.0
    %1779 = vmatprep.subr.mxu0 0.0
    %1780 = vmatpush1.msra.mxu0 0.0
    %1781 = vmatprep.subr.mxu0 0.0
    %1782 = vmatpush1.msra.mxu0 0.0
    %1783 = vmatprep.subr.mxu0 0.0
    %1784 = vmatpush1.msra.mxu0 0.0
    %1785 = vmatprep.subr.mxu0 0.0
    %1786 = vmatpush1.msra.mxu0 0.0
    %1787 = vmatprep.subr.mxu0 0.0
    %1788 = vmatpush1.msra.mxu0 0.0
    %1789 = vmatprep.subr.mxu0 0.0
    %1790 = vmatpush1.msra.mxu0 0.0
    %1791 = vmatprep.subr.mxu0 0.0
    %1792 = vmatpush1.msra.mxu0 0.0
    %1793 = vmatprep.subr.mxu0 %v688
    %1794 = vmatpush1.msra.mxu0 %v687
    %1795 = vmatprep.subr.mxu0 %v637
    %1796 = vmatpush1.msra.mxu0 %v636
    %1797 = vmatprep.subr.mxu0 %v586
    %1798 = vmatpush1.msra.mxu0 %v585
    %1799 = vmatprep.subr.mxu0 %v535
    %1800 = vmatpush1.msra.mxu0 %v534
    %1801 = vmatprep.subr.mxu0 %v484
    %1802 = vmatpush1.msra.mxu0 %v483
    %1803 = vmatprep.subr.mxu0 %v433
    %1804 = vmatpush1.msra.mxu0 %v432
    %1805 = vmatprep.subr.mxu0 %v382
    %1806 = vmatpush1.msra.mxu0 %v381
    %1807 = vmatprep.subr.mxu0 %v331
    %1808 = vmatpush1.msra.mxu0 %v330
    %1809 = vmatprep.subr.mxu0 0.0
    %1810 = vmatpush2.msra.mxu0 0.0
    %1811 = vmatprep.subr.mxu0 0.0
    %1812 = vmatpush2.msra.mxu0 0.0
    %1813 = vmatprep.subr.mxu0 0.0
    %1814 = vmatpush2.msra.mxu0 0.0
    %1815 = vmatprep.subr.mxu0 0.0
    %1816 = vmatpush2.msra.mxu0 0.0
    %1817 = vmatprep.subr.mxu0 0.0
    %1818 = vmatpush2.msra.mxu0 0.0
    %1819 = vmatprep.subr.mxu0 0.0
    %1820 = vmatpush2.msra.mxu0 0.0
    %1821 = vmatprep.subr.mxu0 0.0
    %1822 = vmatpush2.msra.mxu0 0.0
    %1823 = vmatprep.subr.mxu0 0.0
    %1824 = vmatpush2.msra.mxu0 0.0
    %1825 = vmatprep.subr.mxu0 0.0
    %1826 = vmatpush2.msra.mxu0 0.0
    %1827 = vmatprep.subr.mxu0 0.0
    %1828 = vmatpush2.msra.mxu0 0.0
    %1829 = vmatprep.subr.mxu0 0.0
    %1830 = vmatpush2.msra.mxu0 0.0
    %1831 = vmatprep.subr.mxu0 0.0
    %1832 = vmatpush2.msra.mxu0 0.0
    %1833 = vmatprep.subr.mxu0 0.0
    %1834 = vmatpush2.msra.mxu0 0.0
    %1835 = vmatprep.subr.mxu0 0.0
    %1836 = vmatpush2.msra.mxu0 0.0
    %1837 = vmatprep.subr.mxu0 0.0
    %1838 = vmatpush2.msra.mxu0 0.0
    %1839 = vmatprep.subr.mxu0 0.0
    %1840 = vmatpush2.msra.mxu0 0.0
    %1841 = vmatprep.mubr.f32.mxu0 0.0
    %1842 = vmatmul.mubr.f32.gmra.mxu0 %v710
    %v1843 = vpop.f32.mrf.mxu0
    %v1844 = vadd.f32 0.0, %v1843
    %v1845 = vpop.f32.mrf.mxu0
    %v1846 = vadd.f32 0.0, %v1845
    %1847 = vdwg.mxu0
    %1848 = vmatprep.subr.mxu0 0.0
    %1849 = vmatpush1.msra.mxu0 0.0
    %1850 = vmatprep.subr.mxu0 0.0
    %1851 = vmatpush1.msra.mxu0 0.0
    %1852 = vmatprep.subr.mxu0 0.0
    %1853 = vmatpush1.msra.mxu0 0.0
    %1854 = vmatprep.subr.mxu0 0.0
    %1855 = vmatpush1.msra.mxu0 0.0
    %1856 = vmatprep.subr.mxu0 0.0
    %1857 = vmatpush1.msra.mxu0 0.0
    %1858 = vmatprep.subr.mxu0 0.0
    %1859 = vmatpush1.msra.mxu0 0.0
    %1860 = vmatprep.subr.mxu0 0.0
    %1861 = vmatpush1.msra.mxu0 0.0
    %1862 = vmatprep.subr.mxu0 0.0
    %1863 = vmatpush1.msra.mxu0 0.0
    %1864 = vmatprep.subr.mxu0 %v690
    %1865 = vmatpush1.msra.mxu0 %v689
    %1866 = vmatprep.subr.mxu0 %v639
    %1867 = vmatpush1.msra.mxu0 %v638
    %1868 = vmatprep.subr.mxu0 %v588
    %1869 = vmatpush1.msra.mxu0 %v587
    %1870 = vmatprep.subr.mxu0 %v537
    %1871 = vmatpush1.msra.mxu0 %v536
    %1872 = vmatprep.subr.mxu0 %v486
    %1873 = vmatpush1.msra.mxu0 %v485
    %1874 = vmatprep.subr.mxu0 %v435
    %1875 = vmatpush1.msra.mxu0 %v434
    %1876 = vmatprep.subr.mxu0 %v384
    %1877 = vmatpush1.msra.mxu0 %v383
    %1878 = vmatprep.subr.mxu0 %v333
    %1879 = vmatpush1.msra.mxu0 %v332
    %1880 = vmatprep.subr.mxu0 0.0
    %1881 = vmatpush2.msra.mxu0 0.0
    %1882 = vmatprep.subr.mxu0 0.0
    %1883 = vmatpush2.msra.mxu0 0.0
    %1884 = vmatprep.subr.mxu0 0.0
    %1885 = vmatpush2.msra.mxu0 0.0
    %1886 = vmatprep.subr.mxu0 0.0
    %1887 = vmatpush2.msra.mxu0 0.0
    %1888 = vmatprep.subr.mxu0 0.0
    %1889 = vmatpush2.msra.mxu0 0.0
    %1890 = vmatprep.subr.mxu0 0.0
    %1891 = vmatpush2.msra.mxu0 0.0
    %1892 = vmatprep.subr.mxu0 0.0
    %1893 = vmatpush2.msra.mxu0 0.0
    %1894 = vmatprep.subr.mxu0 0.0
    %1895 = vmatpush2.msra.mxu0 0.0
    %1896 = vmatprep.subr.mxu0 0.0
    %1897 = vmatpush2.msra.mxu0 0.0
    %1898 = vmatprep.subr.mxu0 0.0
    %1899 = vmatpush2.msra.mxu0 0.0
    %1900 = vmatprep.subr.mxu0 0.0
    %1901 = vmatpush2.msra.mxu0 0.0
    %1902 = vmatprep.subr.mxu0 0.0
    %1903 = vmatpush2.msra.mxu0 0.0
    %1904 = vmatprep.subr.mxu0 0.0
    %1905 = vmatpush2.msra.mxu0 0.0
    %1906 = vmatprep.subr.mxu0 0.0
    %1907 = vmatpush2.msra.mxu0 0.0
    %1908 = vmatprep.subr.mxu0 0.0
    %1909 = vmatpush2.msra.mxu0 0.0
    %1910 = vmatprep.subr.mxu0 0.0
    %1911 = vmatpush2.msra.mxu0 0.0
    %1912 = vmatprep.mubr.f32.mxu0 0.0
    %1913 = vmatmul.mubr.f32.gmra.mxu0 %v710
    %v1914 = vpop.f32.mrf.mxu0
    %v1915 = vadd.f32 0.0, %v1914
    %v1916 = vpop.f32.mrf.mxu0
    %v1917 = vadd.f32 0.0, %v1916
    %1918 = vdwg.mxu0
    %1919 = vmatprep.subr.mxu0 0.0
    %1920 = vmatpush1.msra.mxu0 0.0
    %1921 = vmatprep.subr.mxu0 0.0
    %1922 = vmatpush1.msra.mxu0 0.0
    %1923 = vmatprep.subr.mxu0 0.0
    %1924 = vmatpush1.msra.mxu0 0.0
    %1925 = vmatprep.subr.mxu0 0.0
    %1926 = vmatpush1.msra.mxu0 0.0
    %1927 = vmatprep.subr.mxu0 0.0
    %1928 = vmatpush1.msra.mxu0 0.0
    %1929 = vmatprep.subr.mxu0 0.0
    %1930 = vmatpush1.msra.mxu0 0.0
    %1931 = vmatprep.subr.mxu0 0.0
    %1932 = vmatpush1.msra.mxu0 0.0
    %1933 = vmatprep.subr.mxu0 0.0
    %1934 = vmatpush1.msra.mxu0 0.0
    %1935 = vmatprep.subr.mxu0 %v692
    %1936 = vmatpush1.msra.mxu0 %v691
    %1937 = vmatprep.subr.mxu0 %v641
    %1938 = vmatpush1.msra.mxu0 %v640
    %1939 = vmatprep.subr.mxu0 %v590
    %1940 = vmatpush1.msra.mxu0 %v589
    %1941 = vmatprep.subr.mxu0 %v539
    %1942 = vmatpush1.msra.mxu0 %v538
    %1943 = vmatprep.subr.mxu0 %v488
    %1944 = vmatpush1.msra.mxu0 %v487
    %1945 = vmatprep.subr.mxu0 %v437
    %1946 = vmatpush1.msra.mxu0 %v436
    %1947 = vmatprep.subr.mxu0 %v386
    %1948 = vmatpush1.msra.mxu0 %v385
    %1949 = vmatprep.subr.mxu0 %v335
    %1950 = vmatpush1.msra.mxu0 %v334
    %1951 = vmatprep.subr.mxu0 0.0
    %1952 = vmatpush2.msra.mxu0 0.0
    %1953 = vmatprep.subr.mxu0 0.0
    %1954 = vmatpush2.msra.mxu0 0.0
    %1955 = vmatprep.subr.mxu0 0.0
    %1956 = vmatpush2.msra.mxu0 0.0
    %1957 = vmatprep.subr.mxu0 0.0
    %1958 = vmatpush2.msra.mxu0 0.0
    %1959 = vmatprep.subr.mxu0 0.0
    %1960 = vmatpush2.msra.mxu0 0.0
    %1961 = vmatprep.subr.mxu0 0.0
    %1962 = vmatpush2.msra.mxu0 0.0
    %1963 = vmatprep.subr.mxu0 0.0
    %1964 = vmatpush2.msra.mxu0 0.0
    %1965 = vmatprep.subr.mxu0 0.0
    %1966 = vmatpush2.msra.mxu0 0.0
    %1967 = vmatprep.subr.mxu0 0.0
    %1968 = vmatpush2.msra.mxu0 0.0
    %1969 = vmatprep.subr.mxu0 0.0
    %1970 = vmatpush2.msra.mxu0 0.0
    %1971 = vmatprep.subr.mxu0 0.0
    %1972 = vmatpush2.msra.mxu0 0.0
    %1973 = vmatprep.subr.mxu0 0.0
    %1974 = vmatpush2.msra.mxu0 0.0
    %1975 = vmatprep.subr.mxu0 0.0
    %1976 = vmatpush2.msra.mxu0 0.0
    %1977 = vmatprep.subr.mxu0 0.0
    %1978 = vmatpush2.msra.mxu0 0.0
    %1979 = vmatprep.subr.mxu0 0.0
    %1980 = vmatpush2.msra.mxu0 0.0
    %1981 = vmatprep.subr.mxu0 0.0
    %1982 = vmatpush2.msra.mxu0 0.0
    %1983 = vmatprep.mubr.f32.mxu0 0.0
    %1984 = vmatmul.mubr.f32.gmra.mxu0 %v710
    %v1985 = vpop.f32.mrf.mxu0
    %v1986 = vadd.f32 0.0, %v1985
    %v1987 = vpop.f32.mrf.mxu0
    %v1988 = vadd.f32 0.0, %v1987
    %1989 = vdwg.mxu0
    %1990 = vmatprep.subr.mxu0 0.0
    %1991 = vmatpush1.msra.mxu0 0.0
    %1992 = vmatprep.subr.mxu0 0.0
    %1993 = vmatpush1.msra.mxu0 0.0
    %1994 = vmatprep.subr.mxu0 0.0
    %1995 = vmatpush1.msra.mxu0 0.0
    %1996 = vmatprep.subr.mxu0 0.0
    %1997 = vmatpush1.msra.mxu0 0.0
    %1998 = vmatprep.subr.mxu0 0.0
    %1999 = vmatpush1.msra.mxu0 0.0
    %2000 = vmatprep.subr.mxu0 0.0
    %2001 = vmatpush1.msra.mxu0 0.0
    %2002 = vmatprep.subr.mxu0 0.0
    %2003 = vmatpush1.msra.mxu0 0.0
    %2004 = vmatprep.subr.mxu0 0.0
    %2005 = vmatpush1.msra.mxu0 0.0
    %2006 = vmatprep.subr.mxu0 %v694
    %2007 = vmatpush1.msra.mxu0 %v693
    %2008 = vmatprep.subr.mxu0 %v643
    %2009 = vmatpush1.msra.mxu0 %v642
    %2010 = vmatprep.subr.mxu0 %v592
    %2011 = vmatpush1.msra.mxu0 %v591
    %2012 = vmatprep.subr.mxu0 %v541
    %2013 = vmatpush1.msra.mxu0 %v540
    %2014 = vmatprep.subr.mxu0 %v490
    %2015 = vmatpush1.msra.mxu0 %v489
    %2016 = vmatprep.subr.mxu0 %v439
    %2017 = vmatpush1.msra.mxu0 %v438
    %2018 = vmatprep.subr.mxu0 %v388
    %2019 = vmatpush1.msra.mxu0 %v387
    %2020 = vmatprep.subr.mxu0 %v337
    %2021 = vmatpush1.msra.mxu0 %v336
    %2022 = vmatprep.subr.mxu0 0.0
    %2023 = vmatpush2.msra.mxu0 0.0
    %2024 = vmatprep.subr.mxu0 0.0
    %2025 = vmatpush2.msra.mxu0 0.0
    %2026 = vmatprep.subr.mxu0 0.0
    %2027 = vmatpush2.msra.mxu0 0.0
    %2028 = vmatprep.subr.mxu0 0.0
    %2029 = vmatpush2.msra.mxu0 0.0
    %2030 = vmatprep.subr.mxu0 0.0
    %2031 = vmatpush2.msra.mxu0 0.0
    %2032 = vmatprep.subr.mxu0 0.0
    %2033 = vmatpush2.msra.mxu0 0.0
    %2034 = vmatprep.subr.mxu0 0.0
    %2035 = vmatpush2.msra.mxu0 0.0
    %2036 = vmatprep.subr.mxu0 0.0
    %2037 = vmatpush2.msra.mxu0 0.0
    %2038 = vmatprep.subr.mxu0 0.0
    %2039 = vmatpush2.msra.mxu0 0.0
    %2040 = vmatprep.subr.mxu0 0.0
    %2041 = vmatpush2.msra.mxu0 0.0
    %2042 = vmatprep.subr.mxu0 0.0
    %2043 = vmatpush2.msra.mxu0 0.0
    %2044 = vmatprep.subr.mxu0 0.0
    %2045 = vmatpush2.msra.mxu0 0.0
    %2046 = vmatprep.subr.mxu0 0.0
    %2047 = vmatpush2.msra.mxu0 0.0
    %2048 = vmatprep.subr.mxu0 0.0
    %2049 = vmatpush2.msra.mxu0 0.0
    %2050 = vmatprep.subr.mxu0 0.0
    %2051 = vmatpush2.msra.mxu0 0.0
    %2052 = vmatprep.subr.mxu0 0.0
    %2053 = vmatpush2.msra.mxu0 0.0
    %2054 = vmatprep.mubr.f32.mxu0 0.0
    %2055 = vmatmul.mubr.f32.gmra.mxu0 %v710
    %v2056 = vpop.f32.mrf.mxu0
    %v2057 = vadd.f32 0.0, %v2056
    %v2058 = vpop.f32.mrf.mxu0
    %v2059 = vadd.f32 0.0, %v2058
    %2060 = vdwg.mxu0
    %2061 = vmatprep.subr.mxu0 0.0
    %2062 = vmatpush1.msra.mxu0 0.0
    %2063 = vmatprep.subr.mxu0 0.0
    %2064 = vmatpush1.msra.mxu0 0.0
    %2065 = vmatprep.subr.mxu0 0.0
    %2066 = vmatpush1.msra.mxu0 0.0
    %2067 = vmatprep.subr.mxu0 0.0
    %2068 = vmatpush1.msra.mxu0 0.0
    %2069 = vmatprep.subr.mxu0 0.0
    %2070 = vmatpush1.msra.mxu0 0.0
    %2071 = vmatprep.subr.mxu0 0.0
    %2072 = vmatpush1.msra.mxu0 0.0
    %2073 = vmatprep.subr.mxu0 0.0
    %2074 = vmatpush1.msra.mxu0 0.0
    %2075 = vmatprep.subr.mxu0 0.0
    %2076 = vmatpush1.msra.mxu0 0.0
    %2077 = vmatprep.subr.mxu0 %v696
    %2078 = vmatpush1.msra.mxu0 %v695
    %2079 = vmatprep.subr.mxu0 %v645
    %2080 = vmatpush1.msra.mxu0 %v644
    %2081 = vmatprep.subr.mxu0 %v594
    %2082 = vmatpush1.msra.mxu0 %v593
    %2083 = vmatprep.subr.mxu0 %v543
    %2084 = vmatpush1.msra.mxu0 %v542
    %2085 = vmatprep.subr.mxu0 %v492
    %2086 = vmatpush1.msra.mxu0 %v491
    %2087 = vmatprep.subr.mxu0 %v441
    %2088 = vmatpush1.msra.mxu0 %v440
    %2089 = vmatprep.subr.mxu0 %v390
    %2090 = vmatpush1.msra.mxu0 %v389
    %2091 = vmatprep.subr.mxu0 %v339
    %2092 = vmatpush1.msra.mxu0 %v338
    %2093 = vmatprep.subr.mxu0 0.0
    %2094 = vmatpush2.msra.mxu0 0.0
    %2095 = vmatprep.subr.mxu0 0.0
    %2096 = vmatpush2.msra.mxu0 0.0
    %2097 = vmatprep.subr.mxu0 0.0
    %2098 = vmatpush2.msra.mxu0 0.0
    %2099 = vmatprep.subr.mxu0 0.0
    %2100 = vmatpush2.msra.mxu0 0.0
    %2101 = vmatprep.subr.mxu0 0.0
    %2102 = vmatpush2.msra.mxu0 0.0
    %2103 = vmatprep.subr.mxu0 0.0
    %2104 = vmatpush2.msra.mxu0 0.0
    %2105 = vmatprep.subr.mxu0 0.0
    %2106 = vmatpush2.msra.mxu0 0.0
    %2107 = vmatprep.subr.mxu0 0.0
    %2108 = vmatpush2.msra.mxu0 0.0
    %2109 = vmatprep.subr.mxu0 0.0
    %2110 = vmatpush2.msra.mxu0 0.0
    %2111 = vmatprep.subr.mxu0 0.0
    %2112 = vmatpush2.msra.mxu0 0.0
    %2113 = vmatprep.subr.mxu0 0.0
    %2114 = vmatpush2.msra.mxu0 0.0
    %2115 = vmatprep.subr.mxu0 0.0
    %2116 = vmatpush2.msra.mxu0 0.0
    %2117 = vmatprep.subr.mxu0 0.0
    %2118 = vmatpush2.msra.mxu0 0.0
    %2119 = vmatprep.subr.mxu0 0.0
    %2120 = vmatpush2.msra.mxu0 0.0
    %2121 = vmatprep.subr.mxu0 0.0
    %2122 = vmatpush2.msra.mxu0 0.0
    %2123 = vmatprep.subr.mxu0 0.0
    %2124 = vmatpush2.msra.mxu0 0.0
    %2125 = vmatprep.mubr.f32.mxu0 0.0
    %2126 = vmatmul.mubr.f32.gmra.mxu0 %v710
    %v2127 = vpop.f32.mrf.mxu0
    %v2128 = vadd.f32 0.0, %v2127
    %v2129 = vpop.f32.mrf.mxu0
    %v2130 = vadd.f32 0.0, %v2129
    %2131 = vdwg.mxu0
    %2132 = vmatprep.subr.mxu0 0.0
    %2133 = vmatpush1.msra.mxu0 0.0
    %2134 = vmatprep.subr.mxu0 0.0
    %2135 = vmatpush1.msra.mxu0 0.0
    %2136 = vmatprep.subr.mxu0 0.0
    %2137 = vmatpush1.msra.mxu0 0.0
    %2138 = vmatprep.subr.mxu0 0.0
    %2139 = vmatpush1.msra.mxu0 0.0
    %2140 = vmatprep.subr.mxu0 0.0
    %2141 = vmatpush1.msra.mxu0 0.0
    %2142 = vmatprep.subr.mxu0 0.0
    %2143 = vmatpush1.msra.mxu0 0.0
    %2144 = vmatprep.subr.mxu0 0.0
    %2145 = vmatpush1.msra.mxu0 0.0
    %2146 = vmatprep.subr.mxu0 0.0
    %2147 = vmatpush1.msra.mxu0 0.0
    %2148 = vmatprep.subr.mxu0 %v698
    %2149 = vmatpush1.msra.mxu0 %v697
    %2150 = vmatprep.subr.mxu0 %v647
    %2151 = vmatpush1.msra.mxu0 %v646
    %2152 = vmatprep.subr.mxu0 %v596
    %2153 = vmatpush1.msra.mxu0 %v595
    %2154 = vmatprep.subr.mxu0 %v545
    %2155 = vmatpush1.msra.mxu0 %v544
    %2156 = vmatprep.subr.mxu0 %v494
    %2157 = vmatpush1.msra.mxu0 %v493
    %2158 = vmatprep.subr.mxu0 %v443
    %2159 = vmatpush1.msra.mxu0 %v442
    %2160 = vmatprep.subr.mxu0 %v392
    %2161 = vmatpush1.msra.mxu0 %v391
    %2162 = vmatprep.subr.mxu0 %v341
    %2163 = vmatpush1.msra.mxu0 %v340
    %2164 = vmatprep.subr.mxu0 0.0
    %2165 = vmatpush2.msra.mxu0 0.0
    %2166 = vmatprep.subr.mxu0 0.0
    %2167 = vmatpush2.msra.mxu0 0.0
    %2168 = vmatprep.subr.mxu0 0.0
    %2169 = vmatpush2.msra.mxu0 0.0
    %2170 = vmatprep.subr.mxu0 0.0
    %2171 = vmatpush2.msra.mxu0 0.0
    %2172 = vmatprep.subr.mxu0 0.0
    %2173 = vmatpush2.msra.mxu0 0.0
    %2174 = vmatprep.subr.mxu0 0.0
    %2175 = vmatpush2.msra.mxu0 0.0
    %2176 = vmatprep.subr.mxu0 0.0
    %2177 = vmatpush2.msra.mxu0 0.0
    %2178 = vmatprep.subr.mxu0 0.0
    %2179 = vmatpush2.msra.mxu0 0.0
    %2180 = vmatprep.subr.mxu0 0.0
    %2181 = vmatpush2.msra.mxu0 0.0
    %2182 = vmatprep.subr.mxu0 0.0
    %2183 = vmatpush2.msra.mxu0 0.0
    %2184 = vmatprep.subr.mxu0 0.0
    %2185 = vmatpush2.msra.mxu0 0.0
    %2186 = vmatprep.subr.mxu0 0.0
    %2187 = vmatpush2.msra.mxu0 0.0
    %2188 = vmatprep.subr.mxu0 0.0
    %2189 = vmatpush2.msra.mxu0 0.0
    %2190 = vmatprep.subr.mxu0 0.0
    %2191 = vmatpush2.msra.mxu0 0.0
    %2192 = vmatprep.subr.mxu0 0.0
    %2193 = vmatpush2.msra.mxu0 0.0
    %2194 = vmatprep.subr.mxu0 0.0
    %2195 = vmatpush2.msra.mxu0 0.0
    %2196 = vmatprep.mubr.f32.mxu0 0.0
    %2197 = vmatmul.mubr.f32.gmra.mxu0 %v710
    %v2198 = vpop.f32.mrf.mxu0
    %v2199 = vadd.f32 0.0, %v2198
    %v2200 = vpop.f32.mrf.mxu0
    %v2201 = vadd.f32 0.0, %v2200
    %2202 = vdwg.mxu0
    %2203 = vmatprep.subr.mxu0 0.0
    %2204 = vmatpush1.msra.mxu0 0.0
    %2205 = vmatprep.subr.mxu0 0.0
    %2206 = vmatpush1.msra.mxu0 0.0
    %2207 = vmatprep.subr.mxu0 0.0
    %2208 = vmatpush1.msra.mxu0 0.0
    %2209 = vmatprep.subr.mxu0 0.0
    %2210 = vmatpush1.msra.mxu0 0.0
    %2211 = vmatprep.subr.mxu0 0.0
    %2212 = vmatpush1.msra.mxu0 0.0
    %2213 = vmatprep.subr.mxu0 0.0
    %2214 = vmatpush1.msra.mxu0 0.0
    %2215 = vmatprep.subr.mxu0 0.0
    %2216 = vmatpush1.msra.mxu0 0.0
    %2217 = vmatprep.subr.mxu0 0.0
    %2218 = vmatpush1.msra.mxu0 0.0
    %2219 = vmatprep.subr.mxu0 %v700
    %2220 = vmatpush1.msra.mxu0 %v699
    %2221 = vmatprep.subr.mxu0 %v649
    %2222 = vmatpush1.msra.mxu0 %v648
    %2223 = vmatprep.subr.mxu0 %v598
    %2224 = vmatpush1.msra.mxu0 %v597
    %2225 = vmatprep.subr.mxu0 %v547
    %2226 = vmatpush1.msra.mxu0 %v546
    %2227 = vmatprep.subr.mxu0 %v496
    %2228 = vmatpush1.msra.mxu0 %v495
    %2229 = vmatprep.subr.mxu0 %v445
    %2230 = vmatpush1.msra.mxu0 %v444
    %2231 = vmatprep.subr.mxu0 %v394
    %2232 = vmatpush1.msra.mxu0 %v393
    %2233 = vmatprep.subr.mxu0 %v343
    %2234 = vmatpush1.msra.mxu0 %v342
    %2235 = vmatprep.subr.mxu0 0.0
    %2236 = vmatpush2.msra.mxu0 0.0
    %2237 = vmatprep.subr.mxu0 0.0
    %2238 = vmatpush2.msra.mxu0 0.0
    %2239 = vmatprep.subr.mxu0 0.0
    %2240 = vmatpush2.msra.mxu0 0.0
    %2241 = vmatprep.subr.mxu0 0.0
    %2242 = vmatpush2.msra.mxu0 0.0
    %2243 = vmatprep.subr.mxu0 0.0
    %2244 = vmatpush2.msra.mxu0 0.0
    %2245 = vmatprep.subr.mxu0 0.0
    %2246 = vmatpush2.msra.mxu0 0.0
    %2247 = vmatprep.subr.mxu0 0.0
    %2248 = vmatpush2.msra.mxu0 0.0
    %2249 = vmatprep.subr.mxu0 0.0
    %2250 = vmatpush2.msra.mxu0 0.0
    %2251 = vmatprep.subr.mxu0 0.0
    %2252 = vmatpush2.msra.mxu0 0.0
    %2253 = vmatprep.subr.mxu0 0.0
    %2254 = vmatpush2.msra.mxu0 0.0
    %2255 = vmatprep.subr.mxu0 0.0
    %2256 = vmatpush2.msra.mxu0 0.0
    %2257 = vmatprep.subr.mxu0 0.0
    %2258 = vmatpush2.msra.mxu0 0.0
    %2259 = vmatprep.subr.mxu0 0.0
    %2260 = vmatpush2.msra.mxu0 0.0
    %2261 = vmatprep.subr.mxu0 0.0
    %2262 = vmatpush2.msra.mxu0 0.0
    %2263 = vmatprep.subr.mxu0 0.0
    %2264 = vmatpush2.msra.mxu0 0.0
    %2265 = vmatprep.subr.mxu0 0.0
    %2266 = vmatpush2.msra.mxu0 0.0
    %2267 = vmatprep.mubr.f32.mxu0 0.0
    %2268 = vmatmul.mubr.f32.gmra.mxu0 %v710
    %v2269 = vpop.f32.mrf.mxu0
    %v2270 = vadd.f32 0.0, %v2269
    %v2271 = vpop.f32.mrf.mxu0
    %v2272 = vadd.f32 0.0, %v2271
    %2273 = vdwg.mxu0
    %2274 = vmatprep.subr.mxu0 0.0
    %2275 = vmatpush1.msra.mxu0 0.0
    %2276 = vmatprep.subr.mxu0 0.0
    %2277 = vmatpush1.msra.mxu0 0.0
    %2278 = vmatprep.subr.mxu0 0.0
    %2279 = vmatpush1.msra.mxu0 0.0
    %2280 = vmatprep.subr.mxu0 0.0
    %2281 = vmatpush1.msra.mxu0 0.0
    %2282 = vmatprep.subr.mxu0 0.0
    %2283 = vmatpush1.msra.mxu0 0.0
    %2284 = vmatprep.subr.mxu0 0.0
    %2285 = vmatpush1.msra.mxu0 0.0
    %2286 = vmatprep.subr.mxu0 0.0
    %2287 = vmatpush1.msra.mxu0 0.0
    %2288 = vmatprep.subr.mxu0 0.0
    %2289 = vmatpush1.msra.mxu0 0.0
    %2290 = vmatprep.subr.mxu0 %v702
    %2291 = vmatpush1.msra.mxu0 %v701
    %2292 = vmatprep.subr.mxu0 %v651
    %2293 = vmatpush1.msra.mxu0 %v650
    %2294 = vmatprep.subr.mxu0 %v600
    %2295 = vmatpush1.msra.mxu0 %v599
    %2296 = vmatprep.subr.mxu0 %v549
    %2297 = vmatpush1.msra.mxu0 %v548
    %2298 = vmatprep.subr.mxu0 %v498
    %2299 = vmatpush1.msra.mxu0 %v497
    %2300 = vmatprep.subr.mxu0 %v447
    %2301 = vmatpush1.msra.mxu0 %v446
    %2302 = vmatprep.subr.mxu0 %v396
    %2303 = vmatpush1.msra.mxu0 %v395
    %2304 = vmatprep.subr.mxu0 %v345
    %2305 = vmatpush1.msra.mxu0 %v344
    %2306 = vmatprep.subr.mxu0 0.0
    %2307 = vmatpush2.msra.mxu0 0.0
    %2308 = vmatprep.subr.mxu0 0.0
    %2309 = vmatpush2.msra.mxu0 0.0
    %2310 = vmatprep.subr.mxu0 0.0
    %2311 = vmatpush2.msra.mxu0 0.0
    %2312 = vmatprep.subr.mxu0 0.0
    %2313 = vmatpush2.msra.mxu0 0.0
    %2314 = vmatprep.subr.mxu0 0.0
    %2315 = vmatpush2.msra.mxu0 0.0
    %2316 = vmatprep.subr.mxu0 0.0
    %2317 = vmatpush2.msra.mxu0 0.0
    %2318 = vmatprep.subr.mxu0 0.0
    %2319 = vmatpush2.msra.mxu0 0.0
    %2320 = vmatprep.subr.mxu0 0.0
    %2321 = vmatpush2.msra.mxu0 0.0
    %2322 = vmatprep.subr.mxu0 0.0
    %2323 = vmatpush2.msra.mxu0 0.0
    %2324 = vmatprep.subr.mxu0 0.0
    %2325 = vmatpush2.msra.mxu0 0.0
    %2326 = vmatprep.subr.mxu0 0.0
    %2327 = vmatpush2.msra.mxu0 0.0
    %2328 = vmatprep.subr.mxu0 0.0
    %2329 = vmatpush2.msra.mxu0 0.0
    %2330 = vmatprep.subr.mxu0 0.0
    %2331 = vmatpush2.msra.mxu0 0.0
    %2332 = vmatprep.subr.mxu0 0.0
    %2333 = vmatpush2.msra.mxu0 0.0
    %2334 = vmatprep.subr.mxu0 0.0
    %2335 = vmatpush2.msra.mxu0 0.0
    %2336 = vmatprep.subr.mxu0 0.0
    %2337 = vmatpush2.msra.mxu0 0.0
    %2338 = vmatprep.mubr.f32.mxu0 0.0
    %2339 = vmatmul.mubr.f32.gmra.mxu0 %v710
    %v2340 = vpop.f32.mrf.mxu0
    %v2341 = vadd.f32 0.0, %v2340
    %v2342 = vpop.f32.mrf.mxu0
    %v2343 = vadd.f32 0.0, %v2342
    %2344 = vdwg.mxu0
    %2345 = vmatprep.subr.mxu0 0.0
    %2346 = vmatpush1.msra.mxu0 0.0
    %2347 = vmatprep.subr.mxu0 0.0
    %2348 = vmatpush1.msra.mxu0 0.0
    %2349 = vmatprep.subr.mxu0 0.0
    %2350 = vmatpush1.msra.mxu0 0.0
    %2351 = vmatprep.subr.mxu0 0.0
    %2352 = vmatpush1.msra.mxu0 0.0
    %2353 = vmatprep.subr.mxu0 0.0
    %2354 = vmatpush1.msra.mxu0 0.0
    %2355 = vmatprep.subr.mxu0 0.0
    %2356 = vmatpush1.msra.mxu0 0.0
    %2357 = vmatprep.subr.mxu0 0.0
    %2358 = vmatpush1.msra.mxu0 0.0
    %2359 = vmatprep.subr.mxu0 0.0
    %2360 = vmatpush1.msra.mxu0 0.0
    %2361 = vmatprep.subr.mxu0 %v704
    %2362 = vmatpush1.msra.mxu0 %v703
    %2363 = vmatprep.subr.mxu0 %v653
    %2364 = vmatpush1.msra.mxu0 %v652
    %2365 = vmatprep.subr.mxu0 %v602
    %2366 = vmatpush1.msra.mxu0 %v601
    %2367 = vmatprep.subr.mxu0 %v551
    %2368 = vmatpush1.msra.mxu0 %v550
    %2369 = vmatprep.subr.mxu0 %v500
    %2370 = vmatpush1.msra.mxu0 %v499
    %2371 = vmatprep.subr.mxu0 %v449
    %2372 = vmatpush1.msra.mxu0 %v448
    %2373 = vmatprep.subr.mxu0 %v398
    %2374 = vmatpush1.msra.mxu0 %v397
    %2375 = vmatprep.subr.mxu0 %v347
    %2376 = vmatpush1.msra.mxu0 %v346
    %2377 = vmatprep.subr.mxu0 0.0
    %2378 = vmatpush2.msra.mxu0 0.0
    %2379 = vmatprep.subr.mxu0 0.0
    %2380 = vmatpush2.msra.mxu0 0.0
    %2381 = vmatprep.subr.mxu0 0.0
    %2382 = vmatpush2.msra.mxu0 0.0
    %2383 = vmatprep.subr.mxu0 0.0
    %2384 = vmatpush2.msra.mxu0 0.0
    %2385 = vmatprep.subr.mxu0 0.0
    %2386 = vmatpush2.msra.mxu0 0.0
    %2387 = vmatprep.subr.mxu0 0.0
    %2388 = vmatpush2.msra.mxu0 0.0
    %2389 = vmatprep.subr.mxu0 0.0
    %2390 = vmatpush2.msra.mxu0 0.0
    %2391 = vmatprep.subr.mxu0 0.0
    %2392 = vmatpush2.msra.mxu0 0.0
    %2393 = vmatprep.subr.mxu0 0.0
    %2394 = vmatpush2.msra.mxu0 0.0
    %2395 = vmatprep.subr.mxu0 0.0
    %2396 = vmatpush2.msra.mxu0 0.0
    %2397 = vmatprep.subr.mxu0 0.0
    %2398 = vmatpush2.msra.mxu0 0.0
    %2399 = vmatprep.subr.mxu0 0.0
    %2400 = vmatpush2.msra.mxu0 0.0
    %2401 = vmatprep.subr.mxu0 0.0
    %2402 = vmatpush2.msra.mxu0 0.0
    %2403 = vmatprep.subr.mxu0 0.0
    %2404 = vmatpush2.msra.mxu0 0.0
    %2405 = vmatprep.subr.mxu0 0.0
    %2406 = vmatpush2.msra.mxu0 0.0
    %2407 = vmatprep.subr.mxu0 0.0
    %2408 = vmatpush2.msra.mxu0 0.0
    %2409 = vmatprep.mubr.f32.mxu0 0.0
    %2410 = vmatmul.mubr.f32.gmra.mxu0 %v710
    %v2411 = vpop.f32.mrf.mxu0
    %v2412 = vadd.f32 0.0, %v2411
    %v2413 = vpop.f32.mrf.mxu0
    %v2414 = vadd.f32 0.0, %v2413
    %2415 = vdwg.mxu0
    %2416 = vmatprep.subr.mxu0 0.0
    %2417 = vmatpush1.msra.mxu0 0.0
    %2418 = vmatprep.subr.mxu0 0.0
    %2419 = vmatpush1.msra.mxu0 0.0
    %2420 = vmatprep.subr.mxu0 0.0
    %2421 = vmatpush1.msra.mxu0 0.0
    %2422 = vmatprep.subr.mxu0 0.0
    %2423 = vmatpush1.msra.mxu0 0.0
    %2424 = vmatprep.subr.mxu0 0.0
    %2425 = vmatpush1.msra.mxu0 0.0
    %2426 = vmatprep.subr.mxu0 0.0
    %2427 = vmatpush1.msra.mxu0 0.0
    %2428 = vmatprep.subr.mxu0 0.0
    %2429 = vmatpush1.msra.mxu0 0.0
    %2430 = vmatprep.subr.mxu0 0.0
    %2431 = vmatpush1.msra.mxu0 0.0
    %2432 = vmatprep.subr.mxu0 %v706
    %2433 = vmatpush1.msra.mxu0 %v705
    %2434 = vmatprep.subr.mxu0 %v655
    %2435 = vmatpush1.msra.mxu0 %v654
    %2436 = vmatprep.subr.mxu0 %v604
    %2437 = vmatpush1.msra.mxu0 %v603
    %2438 = vmatprep.subr.mxu0 %v553
    %2439 = vmatpush1.msra.mxu0 %v552
    %2440 = vmatprep.subr.mxu0 %v502
    %2441 = vmatpush1.msra.mxu0 %v501
    %2442 = vmatprep.subr.mxu0 %v451
    %2443 = vmatpush1.msra.mxu0 %v450
    %2444 = vmatprep.subr.mxu0 %v400
    %2445 = vmatpush1.msra.mxu0 %v399
    %2446 = vmatprep.subr.mxu0 %v349
    %2447 = vmatpush1.msra.mxu0 %v348
    %2448 = vmatprep.subr.mxu0 0.0
    %2449 = vmatpush2.msra.mxu0 0.0
    %2450 = vmatprep.subr.mxu0 0.0
    %2451 = vmatpush2.msra.mxu0 0.0
    %2452 = vmatprep.subr.mxu0 0.0
    %2453 = vmatpush2.msra.mxu0 0.0
    %2454 = vmatprep.subr.mxu0 0.0
    %2455 = vmatpush2.msra.mxu0 0.0
    %2456 = vmatprep.subr.mxu0 0.0
    %2457 = vmatpush2.msra.mxu0 0.0
    %2458 = vmatprep.subr.mxu0 0.0
    %2459 = vmatpush2.msra.mxu0 0.0
    %2460 = vmatprep.subr.mxu0 0.0
    %2461 = vmatpush2.msra.mxu0 0.0
    %2462 = vmatprep.subr.mxu0 0.0
    %2463 = vmatpush2.msra.mxu0 0.0
    %2464 = vmatprep.subr.mxu0 0.0
    %2465 = vmatpush2.msra.mxu0 0.0
    %2466 = vmatprep.subr.mxu0 0.0
    %2467 = vmatpush2.msra.mxu0 0.0
    %2468 = vmatprep.subr.mxu0 0.0
    %2469 = vmatpush2.msra.mxu0 0.0
    %2470 = vmatprep.subr.mxu0 0.0
    %2471 = vmatpush2.msra.mxu0 0.0
    %2472 = vmatprep.subr.mxu0 0.0
    %2473 = vmatpush2.msra.mxu0 0.0
    %2474 = vmatprep.subr.mxu0 0.0
    %2475 = vmatpush2.msra.mxu0 0.0
    %2476 = vmatprep.subr.mxu0 0.0
    %2477 = vmatpush2.msra.mxu0 0.0
    %2478 = vmatprep.subr.mxu0 0.0
    %2479 = vmatpush2.msra.mxu0 0.0
    %2480 = vmatprep.mubr.f32.mxu0 0.0
    %2481 = vmatmul.mubr.f32.gmra.mxu0 %v710
    %v2482 = vpop.f32.mrf.mxu0
    %v2483 = vadd.f32 0.0, %v2482
    %v2484 = vpop.f32.mrf.mxu0
    %v2485 = vadd.f32 0.0, %v2484
    %2486 = vdwg.mxu0
    %2487 = vmatprep.subr.mxu0 0.0
    %2488 = vmatpush1.msra.mxu0 0.0
    %2489 = vmatprep.subr.mxu0 0.0
    %2490 = vmatpush1.msra.mxu0 0.0
    %2491 = vmatprep.subr.mxu0 0.0
    %2492 = vmatpush1.msra.mxu0 0.0
    %2493 = vmatprep.subr.mxu0 0.0
    %2494 = vmatpush1.msra.mxu0 0.0
    %2495 = vmatprep.subr.mxu0 0.0
    %2496 = vmatpush1.msra.mxu0 0.0
    %2497 = vmatprep.subr.mxu0 0.0
    %2498 = vmatpush1.msra.mxu0 0.0
    %2499 = vmatprep.subr.mxu0 0.0
    %2500 = vmatpush1.msra.mxu0 0.0
    %2501 = vmatprep.subr.mxu0 0.0
    %2502 = vmatpush1.msra.mxu0 0.0
    %2503 = vmatprep.subr.mxu0 0.0
    %2504 = vmatpush1.msra.mxu0 %v707
    %2505 = vmatprep.subr.mxu0 0.0
    %2506 = vmatpush1.msra.mxu0 %v656
    %2507 = vmatprep.subr.mxu0 0.0
    %2508 = vmatpush1.msra.mxu0 %v605
    %2509 = vmatprep.subr.mxu0 0.0
    %2510 = vmatpush1.msra.mxu0 %v554
    %2511 = vmatprep.subr.mxu0 0.0
    %2512 = vmatpush1.msra.mxu0 %v503
    %2513 = vmatprep.subr.mxu0 0.0
    %2514 = vmatpush1.msra.mxu0 %v452
    %2515 = vmatprep.subr.mxu0 0.0
    %2516 = vmatpush1.msra.mxu0 %v401
    %2517 = vmatprep.subr.mxu0 0.0
    %2518 = vmatpush1.msra.mxu0 %v350
    %2519 = vmatprep.subr.mxu0 0.0
    %2520 = vmatpush2.msra.mxu0 0.0
    %2521 = vmatprep.subr.mxu0 0.0
    %2522 = vmatpush2.msra.mxu0 0.0
    %2523 = vmatprep.subr.mxu0 0.0
    %2524 = vmatpush2.msra.mxu0 0.0
    %2525 = vmatprep.subr.mxu0 0.0
    %2526 = vmatpush2.msra.mxu0 0.0
    %2527 = vmatprep.subr.mxu0 0.0
    %2528 = vmatpush2.msra.mxu0 0.0
    %2529 = vmatprep.subr.mxu0 0.0
    %2530 = vmatpush2.msra.mxu0 0.0
    %2531 = vmatprep.subr.mxu0 0.0
    %2532 = vmatpush2.msra.mxu0 0.0
    %2533 = vmatprep.subr.mxu0 0.0
    %2534 = vmatpush2.msra.mxu0 0.0
    %2535 = vmatprep.subr.mxu0 0.0
    %2536 = vmatpush2.msra.mxu0 0.0
    %2537 = vmatprep.subr.mxu0 0.0
    %2538 = vmatpush2.msra.mxu0 0.0
    %2539 = vmatprep.subr.mxu0 0.0
    %2540 = vmatpush2.msra.mxu0 0.0
    %2541 = vmatprep.subr.mxu0 0.0
    %2542 = vmatpush2.msra.mxu0 0.0
    %2543 = vmatprep.subr.mxu0 0.0
    %2544 = vmatpush2.msra.mxu0 0.0
    %2545 = vmatprep.subr.mxu0 0.0
    %2546 = vmatpush2.msra.mxu0 0.0
    %2547 = vmatprep.subr.mxu0 0.0
    %2548 = vmatpush2.msra.mxu0 0.0
    %2549 = vmatprep.subr.mxu0 0.0
    %2550 = vmatpush2.msra.mxu0 0.0
    %2551 = vmatprep.mubr.f32.mxu0 0.0
    %2552 = vmatmul.mubr.f32.gmra.mxu0 %v710
    %v2553 = vpop.f32.mrf.mxu0
    %v2554 = vadd.f32 0.0, %v2553
    %v2555 = vpop.f32.mrf.mxu0
    %2556 = vdwg.mxu0
    %v2607 = vcombine.low %v779, %v781
    %v2608 = vcombine.low %v850, %v852
    %v2609 = vcombine.low %v921, %v923
    %v2610 = vcombine.low %v992, %v994
    %v2611 = vcombine.low %v1063, %v1065
    %v2612 = vcombine.low %v1134, %v1136
    %v2613 = vcombine.low %v1205, %v1207
    %v2614 = vcombine.low %v1276, %v1278
    %v2615 = vcombine.low %v1347, %v1349
    %v2616 = vcombine.low %v1418, %v1420
    %v2617 = vcombine.low %v1489, %v1491
    %v2618 = vcombine.low %v1560, %v1562
    %v2619 = vcombine.low %v1631, %v1633
    %v2620 = vcombine.low %v1702, %v1704
    %v2621 = vcombine.low %v1773, %v1775
    %v2622 = vcombine.low %v1844, %v1846
    %v2623 = vcombine.low %v1915, %v1917
    %v2624 = vcombine.low %v1986, %v1988
    %v2625 = vcombine.low %v2057, %v2059
    %v2626 = vcombine.low %v2128, %v2130
    %v2627 = vcombine.low %v2199, %v2201
    %v2628 = vcombine.low %v2270, %v2272
    %v2629 = vcombine.low %v2341, %v2343
    %v2630 = vcombine.low %v2412, %v2414
    %v2631 = vcombine.low %v2483, %v2485
    %2657 = vst [vmem:[#allocation10] sm:$0xff] %v2607
    %2658 = vst [vmem:[#allocation10 + $0x8] sm:$0xff] %v2608
    %2659 = vst [vmem:[#allocation10 + $0x10] sm:$0xff] %v2609
    %2660 = vst [vmem:[#allocation10 + $0x18] sm:$0xff] %v2610
    %2661 = vst [vmem:[#allocation10 + $0x20] sm:$0xff] %v2611
    %2662 = vst [vmem:[#allocation10 + $0x28] sm:$0xff] %v2612
    %2663 = vst [vmem:[#allocation10 + $0x30] sm:$0xff] %v2613
    %2664 = vst [vmem:[#allocation10 + $0x38] sm:$0xff] %v2614
    %2665 = vst [vmem:[#allocation10 + $0x40] sm:$0xff] %v2615
    %2666 = vst [vmem:[#allocation10 + $0x48] sm:$0xff] %v2616
    %2667 = vst [vmem:[#allocation10 + $0x50] sm:$0xff] %v2617
    %2668 = vst [vmem:[#allocation10 + $0x58] sm:$0xff] %v2618
    %2669 = vst [vmem:[#allocation10 + $0x60] sm:$0xff] %v2619
    %2670 = vst [vmem:[#allocation10 + $0x68] sm:$0xff] %v2620
    %2671 = vst [vmem:[#allocation10 + $0x70] sm:$0xff] %v2621
    %2672 = vst [vmem:[#allocation10 + $0x78] sm:$0xff] %v2622
    %2673 = vst [vmem:[#allocation10 + $0x80] sm:$0xff] %v2623
    %2674 = vst [vmem:[#allocation10 + $0x88] sm:$0xff] %v2624
    %2675 = vst [vmem:[#allocation10 + $0x90] sm:$0xff] %v2625
    %2676 = vst [vmem:[#allocation10 + $0x98] sm:$0xff] %v2626
    %2677 = vst [vmem:[#allocation10 + $0xa0] sm:$0xff] %v2627
    %2678 = vst [vmem:[#allocation10 + $0xa8] sm:$0xff] %v2628
    %2679 = vst [vmem:[#allocation10 + $0xb0] sm:$0xff] %v2629
    %2680 = vst [vmem:[#allocation10 + $0xb8] sm:$0xff] %v2630
    %2681 = vst [vmem:[#allocation10 + $0xc0] sm:$0xff] %v2631
    %vm2682 = vcmask 814080
    %2683 = vst.msk [vmem:[#allocation10 + $0xc8] sm:$0xf] %vm2682, %v2554
    // Predicated region
    $region34: #{tpu_custom_call.1} parent=1 // pred_check
      _
    $region35: #{tpu_custom_call.1} parent=1 // pred_check_branch
      %2685 = sbr.rel (0) target = $region37
    $region36: #{tpu_custom_call.1} parent=1 // pred_region
      %s2687 = ssub.s32 3264, 3264
      %2688 = vsyncadd [#allocation4], %s2687
      %s2690 = sshll.u32 [#allocation10], 4
      %s2691 = int_to_ptr.vmem [resolvable:$true] %s2690
      %2693 = dma.vmem_to_hbm [thread:$0]  %s2691, 3264, %s4, [#allocation4]
    $region37: #{tpu_custom_call.1} parent=1 // pred_fallthru
      _
    // Predicated region
    $region38: #{tpu_custom_call.1} parent=1 // pred_check
      _
    $region39: #{tpu_custom_call.1} parent=1 // pred_check_branch
      %2695 = sbr.rel (0) target = $region41
    $region40: #{tpu_custom_call.1} parent=1 // pred_region
      %2696 = dma.done [#allocation4], 3264
    $region41: #{tpu_custom_call.1} parent=1 // pred_fallthru
      _
    %2697 = vsyncpa [#allocation3], 1
    %2698 = vsyncpa [#allocation6], 1
    %2699 = vsyncpa [#allocation9], 1
    %2700 = vsyncpa [#allocation4], 1

</llo_original>
